<compile_context>
chip_gen: v7x
topology: tpu7x:2x2x1
jax: 0.10.0
libtpu: 0.0.40
codegen_flags: <defaults>
</compile_context>

<pallas_src>
import functools

import jax
import jax.numpy as jnp
from jax.experimental import pallas as pl
from jax.experimental.pallas import tpu as pltpu


def _round_up(x, m):
    return ((x + m - 1) // m) * m


def _piston_spring_kernel(p_ref, x0_ref, u_ref, pred_ref, *, h, T, nx, nu):
    """Full T-step rollout for one batch tile; batch lives in the lane dim.

    p_ref    : SMEM f32[P]         packed scalars: K | b | Tvec | Wg | bg | G
    x0_ref   : VMEM f32[nx,   Bt]  initial state in column (state-major) form
    u_ref    : VMEM f32[T*nu, Bt]  controls, time/actuator-major, batch in lanes
    pred_ref : VMEM f32[T*nx, Bt]  predictions, time/state-major, batch in lanes
    """
    off_b = nx * nx
    off_T = off_b + nx
    off_wg = off_T + (nx - 2)
    off_bg = off_wg + 2 * nx
    off_G = off_bg + 1

    # Hoist every loop-invariant scalar parameter read out of the recurrence.
    K = [[p_ref[i * nx + j] for j in range(nx)] for i in range(nx)]
    b = [p_ref[off_b + i] for i in range(nx)]
    Tv = [p_ref[off_T + i] for i in range(nx - 2)]
    wgx = [p_ref[off_wg + i] for i in range(nx)]
    wgd = [p_ref[off_wg + nx + i] for i in range(nx)]
    bg = p_ref[off_bg]
    G = [[p_ref[off_G + i * nu + j] for j in range(nu)] for i in range(nx)]

    # State kept as nx separate (1, Bt) lane-dense rows.
    x = [x0_ref[i:i + 1, :] for i in range(nx)]
    for i in range(nx):
        pred_ref[i:i + 1, :] = x[i]

    # T is small and static -> fully unrolled recurrence.
    for t in range(T - 1):
        # dH/dx = K^T tanh(K x + b)   (scalar-broadcast MACs on the VPU)
        th = []
        for i in range(nx):
            z = x[0] * K[i][0]
            for j in range(1, nx):
                z = z + x[j] * K[i][j]
            th.append(jnp.tanh(z + b[i]))
        d = []
        for i in range(nx):
            s = th[0] * K[0][i]
            for j in range(1, nx):
                s = s + th[j] * K[j][i]
            d.append(s)

        # gamma = sigmoid([x; dH] @ Wg^T + bg) * dH[3]
        logit = x[0] * wgx[0]
        for i in range(1, nx):
            logit = logit + x[i] * wgx[i]
        for i in range(nx):
            logit = logit + d[i] * wgd[i]
        # NOTE: torch hard-indexes dH[:, 3, 0]; equals nx-1 only because nx == 4.
        gamma = jax.nn.sigmoid(logit + bg) * d[3]

        # (R + J) @ dH expanded analytically (no matmuls):
        #   (J d)[0]    = 0
        #   (J d)[i]    = -Tv[i-1] * d[nx-1]      for i in 1..nx-2
        #   (J d)[nx-1] = sum_{j=1..nx-2} Tv[j-1] * d[j]
        #   (R d)[0]    =  gamma * d[nx-1]
        #   (R d)[nx-1] = -gamma * d[0]
        rj = [None] * nx
        rj[0] = gamma * d[nx - 1]
        for i in range(1, nx - 1):
            rj[i] = d[nx - 1] * (-Tv[i - 1])
        last = d[1] * Tv[0]
        for j in range(2, nx - 1):
            last = last + d[j] * Tv[j - 1]
        rj[nx - 1] = last - gamma * d[0]

        # Euler step; control term G @ u_t formed in-kernel (nu is tiny).
        xn = []
        for i in range(nx):
            upd = rj[i]
            for j in range(nu):
                upd = upd + u_ref[t * nu + j:t * nu + j + 1, :] * G[i][j]
            xn.append(x[i] + h * upd)
        x = xn

        base = (t + 1) * nx
        for i in range(nx):
            pred_ref[base + i:base + i + 1, :] = x[i]


def piston_spring_forward(x0, u, params, h):
    """Pallas forward for PistonSpring (parametrize_H_J=True).

    x0 : (B, 1, nx)
    u  : (B, T, nu)
    params = (K, b, G, Tvec, Wg, bg) with torch layouts:
        K (nx, nx), b (nx, 1), G (nx, nu), Tvec (nx-2,),
        Wg (1, 2*nx)  [gamma Linear .weight],  bg (1,) [gamma Linear .bias]
    returns predictions (B, T, nx) float32
    """
    K, b, G, Tvec, Wg, bg = params
    B, _, nx = x0.shape
    _, T, nu = u.shape
    assert nx >= 4, "gamma hard-indexes state component 3, as in the torch model"

    f32 = jnp.float32
    # Pack every tiny parameter into ONE SMEM scalar table (single small DMA,
    # no per-parameter (8,128)-padded VMEM tiles).
    p = jnp.concatenate([
        K.astype(f32).reshape(-1),
        b.astype(f32).reshape(-1),
        Tvec.astype(f32).reshape(-1),
        Wg.astype(f32).reshape(-1),
        jnp.asarray(bg, f32).reshape(-1),
        G.astype(f32).reshape(-1),
    ])

    # Batch -> lane dimension; pad to a multiple of 128 lanes.
    Bp = _round_up(max(B, 1), 128)
    if Bp <= 128:
        b_tile = Bp          # single tile (2nd v7x TC idle; B too small to matter)
    else:
        # >= 2 grid steps so the "parallel" batch axis can shard across v7x's
        # two TensorCores; per-tile VMEM stays trivially small either way.
        b_tile = min(_round_up(Bp // 2, 128), 1024)
        Bp = _round_up(Bp, b_tile)

    x0c = jnp.transpose(x0[:, 0, :].astype(f32), (1, 0))                  # (nx, B)
    uc = jnp.transpose(u.astype(f32), (1, 2, 0)).reshape(T * nu, B)       # (T*nu, B)
    if Bp != B:
        x0c = jnp.pad(x0c, ((0, 0), (0, Bp - B)))
        uc = jnp.pad(uc, ((0, 0), (0, Bp - B)))

    grid = (Bp // b_tile,)
    pred = pl.pallas_call(
        functools.partial(_piston_spring_kernel, h=float(h), T=int(T),
                          nx=int(nx), nu=int(nu)),
        out_shape=jax.ShapeDtypeStruct((T * nx, Bp), f32),
        grid=grid,
        in_specs=[
            pl.BlockSpec(memory_space=pltpu.MemorySpace.SMEM),            # params
            pl.BlockSpec((nx, b_tile), lambda i: (0, i)),                 # x0 cols
            pl.BlockSpec((T * nu, b_tile), lambda i: (0, i)),             # u cols
        ],
        out_specs=pl.BlockSpec((T * nx, b_tile), lambda i: (0, i)),
        compiler_params=pltpu.CompilerParams(
            dimension_semantics=("parallel",)),
    )(p, x0c, uc)

    # (T*nx, Bp) -> (B, T, nx): single transpose, done on lane-dense data.
    return jnp.transpose(pred.reshape(T, nx, Bp), (2, 0, 1))[:B]


def reference_forward(x0, u, params, h):
    """Pure-JAX mirror of PistonSpring.forward (parametrize_H_J branch)."""
    K, b, G, Tvec, Wg, bg = params
    nx = K.shape[0]
    Bsz, Tlen, _ = u.shape
    x = jnp.transpose(x0, (0, 2, 1))                       # (B, nx, 1)
    preds = [x[:, :, 0]]
    for t in range(Tlen - 1):
        dH = jnp.einsum('ji,bjk->bik', K,
                        jnp.tanh(jnp.einsum('ij,bjk->bik', K, x) + b))
        J = jnp.zeros((Bsz, nx, nx))
        J = J.at[:, nx - 1, 1:nx - 1].set(Tvec)
        J = J.at[:, 1:nx - 1, nx - 1].set(-Tvec)
        inp = jnp.concatenate([x, dH], axis=1)[:, :, 0]    # (B, 2*nx)
        gamma = (jax.nn.sigmoid(inp @ Wg.T + bg) * dH[:, 3, :])[:, 0]   # (B,)
        R = jnp.zeros((Bsz, nx, nx))
        R = R.at[:, nx - 1, 0].set(-gamma)
        R = R.at[:, 0, nx - 1].set(gamma)
        Gu = jnp.einsum('xu,buk->bxk', G, u[:, t, :, None])
        x = x + h * ((R + J) @ dH + Gu)
        preds.append(x[:, :, 0])
    return jnp.stack(preds, axis=1)


if __name__ == "__main__":
    # Match the reference's f32 matmul precision to the kernel's exact-f32 VPU math.
    jax.config.update("jax_default_matmul_precision", "highest")

    # Piston-spring state dim nx = 4 (gamma hard-indexes state 3), single
    # actuation nu = 1, batch B = 4, horizon T = 8.
    nx, nu = 4, 1
    B, T = 4, 8
    h = 0.05

    key = jax.random.PRNGKey(0)
    ks = jax.random.split(key, 7)
    K = 0.5 * jax.random.normal(ks[0], (nx, nx), jnp.float32)
    b = 0.5 * jax.random.normal(ks[1], (nx, 1), jnp.float32)
    G = jnp.zeros((nx, nu), jnp.float32).at[-1, 0].set(-1.0)       # fixed, as in __init__
    Tvec = 0.5 * jax.random.normal(ks[2], (nx - 2,), jnp.float32)
    Wg = 0.5 * jax.random.normal(ks[3], (1, 2 * nx), jnp.float32)  # gamma Linear weight
    bg = 0.5 * jax.random.normal(ks[4], (1,), jnp.float32)         # gamma Linear bias
    params = (K, b, G, Tvec, Wg, bg)

    x0 = jax.random.normal(ks[5], (B, 1, nx), jnp.float32)
    u = jax.random.normal(ks[6], (B, T, nu), jnp.float32)

    preds = piston_spring_forward(x0, u, params, h)
    preds = jax.block_until_ready(preds)

    ref = reference_forward(x0, u, params, h)
    assert preds.shape == (B, T, nx), preds.shape
    err = float(jnp.max(jnp.abs(preds - ref)))
    assert jnp.allclose(preds, ref, rtol=1e-3, atol=1e-3), err

    print("KERNEL_OK")
</pallas_src>

<mosaic_0001>
module attributes {stable_mosaic.version = 11 : i64} {
  func.func @_piston_spring_kernel(%arg0: i32, %arg1: memref<35xf32, #tpu.memory_space<smem>>, %arg2: memref<4x128xf32, #tpu.memory_space<vmem>>, %arg3: memref<8x128xf32, #tpu.memory_space<vmem>>, %arg4: memref<32x128xf32, #tpu.memory_space<vmem>>) attributes {dimension_semantics = [#tpu.dimension_semantics<parallel>], iteration_bounds = array<i64: 1>, scalar_prefetch = 0 : i64, scratch_operands = 0 : i64, tpu.core_type = #tpu.core_type<tc>, window_params = [{transform_indices = @transform_0, window_bounds = array<i64: 35>}, {transform_indices = @transform_1, window_bounds = array<i64: 4, 128>}, {transform_indices = @transform_2, window_bounds = array<i64: 8, 128>}, {transform_indices = @transform_3, window_bounds = array<i64: 32, 128>}]} {
    %c0 = arith.constant 0 : index
    %0 = memref.load %arg1[%c0] : memref<35xf32, #tpu.memory_space<smem>>
    %c1 = arith.constant 1 : index
    %1 = memref.load %arg1[%c1] : memref<35xf32, #tpu.memory_space<smem>>
    %c2 = arith.constant 2 : index
    %2 = memref.load %arg1[%c2] : memref<35xf32, #tpu.memory_space<smem>>
    %c3 = arith.constant 3 : index
    %3 = memref.load %arg1[%c3] : memref<35xf32, #tpu.memory_space<smem>>
    %c4 = arith.constant 4 : index
    %4 = memref.load %arg1[%c4] : memref<35xf32, #tpu.memory_space<smem>>
    %c5 = arith.constant 5 : index
    %5 = memref.load %arg1[%c5] : memref<35xf32, #tpu.memory_space<smem>>
    %c6 = arith.constant 6 : index
    %6 = memref.load %arg1[%c6] : memref<35xf32, #tpu.memory_space<smem>>
    %c7 = arith.constant 7 : index
    %7 = memref.load %arg1[%c7] : memref<35xf32, #tpu.memory_space<smem>>
    %c8 = arith.constant 8 : index
    %8 = memref.load %arg1[%c8] : memref<35xf32, #tpu.memory_space<smem>>
    %c9 = arith.constant 9 : index
    %9 = memref.load %arg1[%c9] : memref<35xf32, #tpu.memory_space<smem>>
    %c10 = arith.constant 10 : index
    %10 = memref.load %arg1[%c10] : memref<35xf32, #tpu.memory_space<smem>>
    %c11 = arith.constant 11 : index
    %11 = memref.load %arg1[%c11] : memref<35xf32, #tpu.memory_space<smem>>
    %c12 = arith.constant 12 : index
    %12 = memref.load %arg1[%c12] : memref<35xf32, #tpu.memory_space<smem>>
    %c13 = arith.constant 13 : index
    %13 = memref.load %arg1[%c13] : memref<35xf32, #tpu.memory_space<smem>>
    %c14 = arith.constant 14 : index
    %14 = memref.load %arg1[%c14] : memref<35xf32, #tpu.memory_space<smem>>
    %c15 = arith.constant 15 : index
    %15 = memref.load %arg1[%c15] : memref<35xf32, #tpu.memory_space<smem>>
    %c16 = arith.constant 16 : index
    %16 = memref.load %arg1[%c16] : memref<35xf32, #tpu.memory_space<smem>>
    %c17 = arith.constant 17 : index
    %17 = memref.load %arg1[%c17] : memref<35xf32, #tpu.memory_space<smem>>
    %c18 = arith.constant 18 : index
    %18 = memref.load %arg1[%c18] : memref<35xf32, #tpu.memory_space<smem>>
    %c19 = arith.constant 19 : index
    %19 = memref.load %arg1[%c19] : memref<35xf32, #tpu.memory_space<smem>>
    %c20 = arith.constant 20 : index
    %20 = memref.load %arg1[%c20] : memref<35xf32, #tpu.memory_space<smem>>
    %c21 = arith.constant 21 : index
    %21 = memref.load %arg1[%c21] : memref<35xf32, #tpu.memory_space<smem>>
    %c22 = arith.constant 22 : index
    %22 = memref.load %arg1[%c22] : memref<35xf32, #tpu.memory_space<smem>>
    %c23 = arith.constant 23 : index
    %23 = memref.load %arg1[%c23] : memref<35xf32, #tpu.memory_space<smem>>
    %c24 = arith.constant 24 : index
    %24 = memref.load %arg1[%c24] : memref<35xf32, #tpu.memory_space<smem>>
    %c25 = arith.constant 25 : index
    %25 = memref.load %arg1[%c25] : memref<35xf32, #tpu.memory_space<smem>>
    %c26 = arith.constant 26 : index
    %26 = memref.load %arg1[%c26] : memref<35xf32, #tpu.memory_space<smem>>
    %c27 = arith.constant 27 : index
    %27 = memref.load %arg1[%c27] : memref<35xf32, #tpu.memory_space<smem>>
    %c28 = arith.constant 28 : index
    %28 = memref.load %arg1[%c28] : memref<35xf32, #tpu.memory_space<smem>>
    %c29 = arith.constant 29 : index
    %29 = memref.load %arg1[%c29] : memref<35xf32, #tpu.memory_space<smem>>
    %c30 = arith.constant 30 : index
    %30 = memref.load %arg1[%c30] : memref<35xf32, #tpu.memory_space<smem>>
    %c31 = arith.constant 31 : index
    %31 = memref.load %arg1[%c31] : memref<35xf32, #tpu.memory_space<smem>>
    %c32 = arith.constant 32 : index
    %32 = memref.load %arg1[%c32] : memref<35xf32, #tpu.memory_space<smem>>
    %c33 = arith.constant 33 : index
    %33 = memref.load %arg1[%c33] : memref<35xf32, #tpu.memory_space<smem>>
    %c34 = arith.constant 34 : index
    %34 = memref.load %arg1[%c34] : memref<35xf32, #tpu.memory_space<smem>>
    %c0_0 = arith.constant 0 : index
    %c0_1 = arith.constant 0 : index
    %35 = vector.load %arg2[%c0_0, %c0_1] : memref<4x128xf32, #tpu.memory_space<vmem>>, vector<1x128xf32>
    %c1_2 = arith.constant 1 : index
    %c0_3 = arith.constant 0 : index
    %36 = vector.load %arg2[%c1_2, %c0_3] : memref<4x128xf32, #tpu.memory_space<vmem>>, vector<1x128xf32>
    %c2_4 = arith.constant 2 : index
    %c0_5 = arith.constant 0 : index
    %37 = vector.load %arg2[%c2_4, %c0_5] : memref<4x128xf32, #tpu.memory_space<vmem>>, vector<1x128xf32>
    %c3_6 = arith.constant 3 : index
    %c0_7 = arith.constant 0 : index
    %38 = vector.load %arg2[%c3_6, %c0_7] : memref<4x128xf32, #tpu.memory_space<vmem>>, vector<1x128xf32>
    %c0_8 = arith.constant 0 : index
    %c0_9 = arith.constant 0 : index
    %39 = vector.load %arg4[%c0_8, %c0_9] : memref<32x128xf32, #tpu.memory_space<vmem>>, vector<1x128xf32>
    tpu.vector_store %arg4[%c0_8, %c0_9], %35 {strides = array<i32>} : memref<32x128xf32, #tpu.memory_space<vmem>>, vector<1x128xf32>,
    %c1_10 = arith.constant 1 : index
    %c0_11 = arith.constant 0 : index
    %40 = vector.load %arg4[%c1_10, %c0_11] : memref<32x128xf32, #tpu.memory_space<vmem>>, vector<1x128xf32>
    tpu.vector_store %arg4[%c1_10, %c0_11], %36 {strides = array<i32>} : memref<32x128xf32, #tpu.memory_space<vmem>>, vector<1x128xf32>,
    %c2_12 = arith.constant 2 : index
    %c0_13 = arith.constant 0 : index
    %41 = vector.load %arg4[%c2_12, %c0_13] : memref<32x128xf32, #tpu.memory_space<vmem>>, vector<1x128xf32>
    tpu.vector_store %arg4[%c2_12, %c0_13], %37 {strides = array<i32>} : memref<32x128xf32, #tpu.memory_space<vmem>>, vector<1x128xf32>,
    %c3_14 = arith.constant 3 : index
    %c0_15 = arith.constant 0 : index
    %42 = vector.load %arg4[%c3_14, %c0_15] : memref<32x128xf32, #tpu.memory_space<vmem>>, vector<1x128xf32>
    tpu.vector_store %arg4[%c3_14, %c0_15], %38 {strides = array<i32>} : memref<32x128xf32, #tpu.memory_space<vmem>>, vector<1x128xf32>,
    %43 = vector.broadcast %0 : f32 to vector<1x128xf32>
    %44 = arith.mulf %35, %43 : vector<1x128xf32>
    %45 = vector.broadcast %1 : f32 to vector<1x128xf32>
    %46 = arith.mulf %36, %45 : vector<1x128xf32>
    %47 = arith.addf %44, %46 : vector<1x128xf32>
    %48 = vector.broadcast %2 : f32 to vector<1x128xf32>
    %49 = arith.mulf %37, %48 : vector<1x128xf32>
    %50 = arith.addf %47, %49 : vector<1x128xf32>
    %51 = vector.broadcast %3 : f32 to vector<1x128xf32>
    %52 = arith.mulf %38, %51 : vector<1x128xf32>
    %53 = arith.addf %50, %52 : vector<1x128xf32>
    %54 = vector.broadcast %16 : f32 to vector<1x128xf32>
    %55 = arith.addf %53, %54 : vector<1x128xf32>
    %56 = math.tanh %55 : vector<1x128xf32>
    %57 = vector.broadcast %4 : f32 to vector<1x128xf32>
    %58 = arith.mulf %35, %57 : vector<1x128xf32>
    %59 = vector.broadcast %5 : f32 to vector<1x128xf32>
    %60 = arith.mulf %36, %59 : vector<1x128xf32>
    %61 = arith.addf %58, %60 : vector<1x128xf32>
    %62 = vector.broadcast %6 : f32 to vector<1x128xf32>
    %63 = arith.mulf %37, %62 : vector<1x128xf32>
    %64 = arith.addf %61, %63 : vector<1x128xf32>
    %65 = vector.broadcast %7 : f32 to vector<1x128xf32>
    %66 = arith.mulf %38, %65 : vector<1x128xf32>
    %67 = arith.addf %64, %66 : vector<1x128xf32>
    %68 = vector.broadcast %17 : f32 to vector<1x128xf32>
    %69 = arith.addf %67, %68 : vector<1x128xf32>
    %70 = math.tanh %69 : vector<1x128xf32>
    %71 = vector.broadcast %8 : f32 to vector<1x128xf32>
    %72 = arith.mulf %35, %71 : vector<1x128xf32>
    %73 = vector.broadcast %9 : f32 to vector<1x128xf32>
    %74 = arith.mulf %36, %73 : vector<1x128xf32>
    %75 = arith.addf %72, %74 : vector<1x128xf32>
    %76 = vector.broadcast %10 : f32 to vector<1x128xf32>
    %77 = arith.mulf %37, %76 : vector<1x128xf32>
    %78 = arith.addf %75, %77 : vector<1x128xf32>
    %79 = vector.broadcast %11 : f32 to vector<1x128xf32>
    %80 = arith.mulf %38, %79 : vector<1x128xf32>
    %81 = arith.addf %78, %80 : vector<1x128xf32>
    %82 = vector.broadcast %18 : f32 to vector<1x128xf32>
    %83 = arith.addf %81, %82 : vector<1x128xf32>
    %84 = math.tanh %83 : vector<1x128xf32>
    %85 = vector.broadcast %12 : f32 to vector<1x128xf32>
    %86 = arith.mulf %35, %85 : vector<1x128xf32>
    %87 = vector.broadcast %13 : f32 to vector<1x128xf32>
    %88 = arith.mulf %36, %87 : vector<1x128xf32>
    %89 = arith.addf %86, %88 : vector<1x128xf32>
    %90 = vector.broadcast %14 : f32 to vector<1x128xf32>
    %91 = arith.mulf %37, %90 : vector<1x128xf32>
    %92 = arith.addf %89, %91 : vector<1x128xf32>
    %93 = vector.broadcast %15 : f32 to vector<1x128xf32>
    %94 = arith.mulf %38, %93 : vector<1x128xf32>
    %95 = arith.addf %92, %94 : vector<1x128xf32>
    %96 = vector.broadcast %19 : f32 to vector<1x128xf32>
    %97 = arith.addf %95, %96 : vector<1x128xf32>
    %98 = math.tanh %97 : vector<1x128xf32>
    %99 = vector.broadcast %0 : f32 to vector<1x128xf32>
    %100 = arith.mulf %56, %99 : vector<1x128xf32>
    %101 = vector.broadcast %4 : f32 to vector<1x128xf32>
    %102 = arith.mulf %70, %101 : vector<1x128xf32>
    %103 = arith.addf %100, %102 : vector<1x128xf32>
    %104 = vector.broadcast %8 : f32 to vector<1x128xf32>
    %105 = arith.mulf %84, %104 : vector<1x128xf32>
    %106 = arith.addf %103, %105 : vector<1x128xf32>
    %107 = vector.broadcast %12 : f32 to vector<1x128xf32>
    %108 = arith.mulf %98, %107 : vector<1x128xf32>
    %109 = arith.addf %106, %108 : vector<1x128xf32>
    %110 = vector.broadcast %1 : f32 to vector<1x128xf32>
    %111 = arith.mulf %56, %110 : vector<1x128xf32>
    %112 = vector.broadcast %5 : f32 to vector<1x128xf32>
    %113 = arith.mulf %70, %112 : vector<1x128xf32>
    %114 = arith.addf %111, %113 : vector<1x128xf32>
    %115 = vector.broadcast %9 : f32 to vector<1x128xf32>
    %116 = arith.mulf %84, %115 : vector<1x128xf32>
    %117 = arith.addf %114, %116 : vector<1x128xf32>
    %118 = vector.broadcast %13 : f32 to vector<1x128xf32>
    %119 = arith.mulf %98, %118 : vector<1x128xf32>
    %120 = arith.addf %117, %119 : vector<1x128xf32>
    %121 = vector.broadcast %2 : f32 to vector<1x128xf32>
    %122 = arith.mulf %56, %121 : vector<1x128xf32>
    %123 = vector.broadcast %6 : f32 to vector<1x128xf32>
    %124 = arith.mulf %70, %123 : vector<1x128xf32>
    %125 = arith.addf %122, %124 : vector<1x128xf32>
    %126 = vector.broadcast %10 : f32 to vector<1x128xf32>
    %127 = arith.mulf %84, %126 : vector<1x128xf32>
    %128 = arith.addf %125, %127 : vector<1x128xf32>
    %129 = vector.broadcast %14 : f32 to vector<1x128xf32>
    %130 = arith.mulf %98, %129 : vector<1x128xf32>
    %131 = arith.addf %128, %130 : vector<1x128xf32>
    %132 = vector.broadcast %3 : f32 to vector<1x128xf32>
    %133 = arith.mulf %56, %132 : vector<1x128xf32>
    %134 = vector.broadcast %7 : f32 to vector<1x128xf32>
    %135 = arith.mulf %70, %134 : vector<1x128xf32>
    %136 = arith.addf %133, %135 : vector<1x128xf32>
    %137 = vector.broadcast %11 : f32 to vector<1x128xf32>
    %138 = arith.mulf %84, %137 : vector<1x128xf32>
    %139 = arith.addf %136, %138 : vector<1x128xf32>
    %140 = vector.broadcast %15 : f32 to vector<1x128xf32>
    %141 = arith.mulf %98, %140 : vector<1x128xf32>
    %142 = arith.addf %139, %141 : vector<1x128xf32>
    %143 = vector.broadcast %22 : f32 to vector<1x128xf32>
    %144 = arith.mulf %35, %143 : vector<1x128xf32>
    %145 = vector.broadcast %23 : f32 to vector<1x128xf32>
    %146 = arith.mulf %36, %145 : vector<1x128xf32>
    %147 = arith.addf %144, %146 : vector<1x128xf32>
    %148 = vector.broadcast %24 : f32 to vector<1x128xf32>
    %149 = arith.mulf %37, %148 : vector<1x128xf32>
    %150 = arith.addf %147, %149 : vector<1x128xf32>
    %151 = vector.broadcast %25 : f32 to vector<1x128xf32>
    %152 = arith.mulf %38, %151 : vector<1x128xf32>
    %153 = arith.addf %150, %152 : vector<1x128xf32>
    %154 = vector.broadcast %26 : f32 to vector<1x128xf32>
    %155 = arith.mulf %109, %154 : vector<1x128xf32>
    %156 = arith.addf %153, %155 : vector<1x128xf32>
    %157 = vector.broadcast %27 : f32 to vector<1x128xf32>
    %158 = arith.mulf %120, %157 : vector<1x128xf32>
    %159 = arith.addf %156, %158 : vector<1x128xf32>
    %160 = vector.broadcast %28 : f32 to vector<1x128xf32>
    %161 = arith.mulf %131, %160 : vector<1x128xf32>
    %162 = arith.addf %159, %161 : vector<1x128xf32>
    %163 = vector.broadcast %29 : f32 to vector<1x128xf32>
    %164 = arith.mulf %142, %163 : vector<1x128xf32>
    %165 = arith.addf %162, %164 : vector<1x128xf32>
    %166 = vector.broadcast %30 : f32 to vector<1x128xf32>
    %167 = arith.addf %165, %166 : vector<1x128xf32>
    %168 = arith.negf %167 : vector<1x128xf32>
    %169 = math.exp %168 : vector<1x128xf32>
    %cst = arith.constant 1.000000e+00 : f32
    %170 = vector.broadcast %cst : f32 to vector<1x128xf32>
    %171 = arith.addf %170, %169 : vector<1x128xf32>
    %172 = arith.divf %170, %171 : vector<1x128xf32>
    %173 = arith.mulf %172, %142 : vector<1x128xf32>
    %174 = arith.mulf %173, %142 : vector<1x128xf32>
    %cst_16 = arith.constant 0.000000e+00 : f32
    %175 = arith.subf %cst_16, %20 : f32
    %176 = vector.broadcast %175 : f32 to vector<1x128xf32>
    %177 = arith.mulf %142, %176 : vector<1x128xf32>
    %cst_17 = arith.constant 0.000000e+00 : f32
    %178 = arith.subf %cst_17, %21 : f32
    %179 = vector.broadcast %178 : f32 to vector<1x128xf32>
    %180 = arith.mulf %142, %179 : vector<1x128xf32>
    %181 = vector.broadcast %20 : f32 to vector<1x128xf32>
    %182 = arith.mulf %120, %181 : vector<1x128xf32>
    %183 = vector.broadcast %21 : f32 to vector<1x128xf32>
    %184 = arith.mulf %131, %183 : vector<1x128xf32>
    %185 = arith.addf %182, %184 : vector<1x128xf32>
    %186 = arith.mulf %173, %109 : vector<1x128xf32>
    %187 = arith.subf %185, %186 : vector<1x128xf32>
    %c0_18 = arith.constant 0 : index
    %c0_19 = arith.constant 0 : index
    %188 = vector.load %arg3[%c0_18, %c0_19] : memref<8x128xf32, #tpu.memory_space<vmem>>, vector<1x128xf32>
    %189 = vector.broadcast %31 : f32 to vector<1x128xf32>
    %190 = arith.mulf %188, %189 : vector<1x128xf32>
    %191 = arith.addf %174, %190 : vector<1x128xf32>
    %cst_20 = arith.constant 5.000000e-02 : f32
    %192 = vector.broadcast %cst_20 : f32 to vector<1x128xf32>
    %193 = arith.mulf %192, %191 : vector<1x128xf32>
    %194 = arith.addf %35, %193 : vector<1x128xf32>
    %c0_21 = arith.constant 0 : index
    %c0_22 = arith.constant 0 : index
    %195 = vector.load %arg3[%c0_21, %c0_22] : memref<8x128xf32, #tpu.memory_space<vmem>>, vector<1x128xf32>
    %196 = vector.broadcast %32 : f32 to vector<1x128xf32>
    %197 = arith.mulf %195, %196 : vector<1x128xf32>
    %198 = arith.addf %177, %197 : vector<1x128xf32>
    %cst_23 = arith.constant 5.000000e-02 : f32
    %199 = vector.broadcast %cst_23 : f32 to vector<1x128xf32>
    %200 = arith.mulf %199, %198 : vector<1x128xf32>
    %201 = arith.addf %36, %200 : vector<1x128xf32>
    %c0_24 = arith.constant 0 : index
    %c0_25 = arith.constant 0 : index
    %202 = vector.load %arg3[%c0_24, %c0_25] : memref<8x128xf32, #tpu.memory_space<vmem>>, vector<1x128xf32>
    %203 = vector.broadcast %33 : f32 to vector<1x128xf32>
    %204 = arith.mulf %202, %203 : vector<1x128xf32>
    %205 = arith.addf %180, %204 : vector<1x128xf32>
    %cst_26 = arith.constant 5.000000e-02 : f32
    %206 = vector.broadcast %cst_26 : f32 to vector<1x128xf32>
    %207 = arith.mulf %206, %205 : vector<1x128xf32>
    %208 = arith.addf %37, %207 : vector<1x128xf32>
    %c0_27 = arith.constant 0 : index
    %c0_28 = arith.constant 0 : index
    %209 = vector.load %arg3[%c0_27, %c0_28] : memref<8x128xf32, #tpu.memory_space<vmem>>, vector<1x128xf32>
    %210 = vector.broadcast %34 : f32 to vector<1x128xf32>
    %211 = arith.mulf %209, %210 : vector<1x128xf32>
    %212 = arith.addf %187, %211 : vector<1x128xf32>
    %cst_29 = arith.constant 5.000000e-02 : f32
    %213 = vector.broadcast %cst_29 : f32 to vector<1x128xf32>
    %214 = arith.mulf %213, %212 : vector<1x128xf32>
    %215 = arith.addf %38, %214 : vector<1x128xf32>
    %c4_30 = arith.constant 4 : index
    %c0_31 = arith.constant 0 : index
    %216 = vector.load %arg4[%c4_30, %c0_31] : memref<32x128xf32, #tpu.memory_space<vmem>>, vector<1x128xf32>
    tpu.vector_store %arg4[%c4_30, %c0_31], %194 {strides = array<i32>} : memref<32x128xf32, #tpu.memory_space<vmem>>, vector<1x128xf32>,
    %c5_32 = arith.constant 5 : index
    %c0_33 = arith.constant 0 : index
    %217 = vector.load %arg4[%c5_32, %c0_33] : memref<32x128xf32, #tpu.memory_space<vmem>>, vector<1x128xf32>
    tpu.vector_store %arg4[%c5_32, %c0_33], %201 {strides = array<i32>} : memref<32x128xf32, #tpu.memory_space<vmem>>, vector<1x128xf32>,
    %c6_34 = arith.constant 6 : index
    %c0_35 = arith.constant 0 : index
    %218 = vector.load %arg4[%c6_34, %c0_35] : memref<32x128xf32, #tpu.memory_space<vmem>>, vector<1x128xf32>
    tpu.vector_store %arg4[%c6_34, %c0_35], %208 {strides = array<i32>} : memref<32x128xf32, #tpu.memory_space<vmem>>, vector<1x128xf32>,
    %c7_36 = arith.constant 7 : index
    %c0_37 = arith.constant 0 : index
    %219 = vector.load %arg4[%c7_36, %c0_37] : memref<32x128xf32, #tpu.memory_space<vmem>>, vector<1x128xf32>
    tpu.vector_store %arg4[%c7_36, %c0_37], %215 {strides = array<i32>} : memref<32x128xf32, #tpu.memory_space<vmem>>, vector<1x128xf32>,
    %220 = vector.broadcast %0 : f32 to vector<1x128xf32>
    %221 = arith.mulf %194, %220 : vector<1x128xf32>
    %222 = vector.broadcast %1 : f32 to vector<1x128xf32>
    %223 = arith.mulf %201, %222 : vector<1x128xf32>
    %224 = arith.addf %221, %223 : vector<1x128xf32>
    %225 = vector.broadcast %2 : f32 to vector<1x128xf32>
    %226 = arith.mulf %208, %225 : vector<1x128xf32>
    %227 = arith.addf %224, %226 : vector<1x128xf32>
    %228 = vector.broadcast %3 : f32 to vector<1x128xf32>
    %229 = arith.mulf %215, %228 : vector<1x128xf32>
    %230 = arith.addf %227, %229 : vector<1x128xf32>
    %231 = vector.broadcast %16 : f32 to vector<1x128xf32>
    %232 = arith.addf %230, %231 : vector<1x128xf32>
    %233 = math.tanh %232 : vector<1x128xf32>
    %234 = vector.broadcast %4 : f32 to vector<1x128xf32>
    %235 = arith.mulf %194, %234 : vector<1x128xf32>
    %236 = vector.broadcast %5 : f32 to vector<1x128xf32>
    %237 = arith.mulf %201, %236 : vector<1x128xf32>
    %238 = arith.addf %235, %237 : vector<1x128xf32>
    %239 = vector.broadcast %6 : f32 to vector<1x128xf32>
    %240 = arith.mulf %208, %239 : vector<1x128xf32>
    %241 = arith.addf %238, %240 : vector<1x128xf32>
    %242 = vector.broadcast %7 : f32 to vector<1x128xf32>
    %243 = arith.mulf %215, %242 : vector<1x128xf32>
    %244 = arith.addf %241, %243 : vector<1x128xf32>
    %245 = vector.broadcast %17 : f32 to vector<1x128xf32>
    %246 = arith.addf %244, %245 : vector<1x128xf32>
    %247 = math.tanh %246 : vector<1x128xf32>
    %248 = vector.broadcast %8 : f32 to vector<1x128xf32>
    %249 = arith.mulf %194, %248 : vector<1x128xf32>
    %250 = vector.broadcast %9 : f32 to vector<1x128xf32>
    %251 = arith.mulf %201, %250 : vector<1x128xf32>
    %252 = arith.addf %249, %251 : vector<1x128xf32>
    %253 = vector.broadcast %10 : f32 to vector<1x128xf32>
    %254 = arith.mulf %208, %253 : vector<1x128xf32>
    %255 = arith.addf %252, %254 : vector<1x128xf32>
    %256 = vector.broadcast %11 : f32 to vector<1x128xf32>
    %257 = arith.mulf %215, %256 : vector<1x128xf32>
    %258 = arith.addf %255, %257 : vector<1x128xf32>
    %259 = vector.broadcast %18 : f32 to vector<1x128xf32>
    %260 = arith.addf %258, %259 : vector<1x128xf32>
    %261 = math.tanh %260 : vector<1x128xf32>
    %262 = vector.broadcast %12 : f32 to vector<1x128xf32>
    %263 = arith.mulf %194, %262 : vector<1x128xf32>
    %264 = vector.broadcast %13 : f32 to vector<1x128xf32>
    %265 = arith.mulf %201, %264 : vector<1x128xf32>
    %266 = arith.addf %263, %265 : vector<1x128xf32>
    %267 = vector.broadcast %14 : f32 to vector<1x128xf32>
    %268 = arith.mulf %208, %267 : vector<1x128xf32>
    %269 = arith.addf %266, %268 : vector<1x128xf32>
    %270 = vector.broadcast %15 : f32 to vector<1x128xf32>
    %271 = arith.mulf %215, %270 : vector<1x128xf32>
    %272 = arith.addf %269, %271 : vector<1x128xf32>
    %273 = vector.broadcast %19 : f32 to vector<1x128xf32>
    %274 = arith.addf %272, %273 : vector<1x128xf32>
    %275 = math.tanh %274 : vector<1x128xf32>
    %276 = vector.broadcast %0 : f32 to vector<1x128xf32>
    %277 = arith.mulf %233, %276 : vector<1x128xf32>
    %278 = vector.broadcast %4 : f32 to vector<1x128xf32>
    %279 = arith.mulf %247, %278 : vector<1x128xf32>
    %280 = arith.addf %277, %279 : vector<1x128xf32>
    %281 = vector.broadcast %8 : f32 to vector<1x128xf32>
    %282 = arith.mulf %261, %281 : vector<1x128xf32>
    %283 = arith.addf %280, %282 : vector<1x128xf32>
    %284 = vector.broadcast %12 : f32 to vector<1x128xf32>
    %285 = arith.mulf %275, %284 : vector<1x128xf32>
    %286 = arith.addf %283, %285 : vector<1x128xf32>
    %287 = vector.broadcast %1 : f32 to vector<1x128xf32>
    %288 = arith.mulf %233, %287 : vector<1x128xf32>
    %289 = vector.broadcast %5 : f32 to vector<1x128xf32>
    %290 = arith.mulf %247, %289 : vector<1x128xf32>
    %291 = arith.addf %288, %290 : vector<1x128xf32>
    %292 = vector.broadcast %9 : f32 to vector<1x128xf32>
    %293 = arith.mulf %261, %292 : vector<1x128xf32>
    %294 = arith.addf %291, %293 : vector<1x128xf32>
    %295 = vector.broadcast %13 : f32 to vector<1x128xf32>
    %296 = arith.mulf %275, %295 : vector<1x128xf32>
    %297 = arith.addf %294, %296 : vector<1x128xf32>
    %298 = vector.broadcast %2 : f32 to vector<1x128xf32>
    %299 = arith.mulf %233, %298 : vector<1x128xf32>
    %300 = vector.broadcast %6 : f32 to vector<1x128xf32>
    %301 = arith.mulf %247, %300 : vector<1x128xf32>
    %302 = arith.addf %299, %301 : vector<1x128xf32>
    %303 = vector.broadcast %10 : f32 to vector<1x128xf32>
    %304 = arith.mulf %261, %303 : vector<1x128xf32>
    %305 = arith.addf %302, %304 : vector<1x128xf32>
    %306 = vector.broadcast %14 : f32 to vector<1x128xf32>
    %307 = arith.mulf %275, %306 : vector<1x128xf32>
    %308 = arith.addf %305, %307 : vector<1x128xf32>
    %309 = vector.broadcast %3 : f32 to vector<1x128xf32>
    %310 = arith.mulf %233, %309 : vector<1x128xf32>
    %311 = vector.broadcast %7 : f32 to vector<1x128xf32>
    %312 = arith.mulf %247, %311 : vector<1x128xf32>
    %313 = arith.addf %310, %312 : vector<1x128xf32>
    %314 = vector.broadcast %11 : f32 to vector<1x128xf32>
    %315 = arith.mulf %261, %314 : vector<1x128xf32>
    %316 = arith.addf %313, %315 : vector<1x128xf32>
    %317 = vector.broadcast %15 : f32 to vector<1x128xf32>
    %318 = arith.mulf %275, %317 : vector<1x128xf32>
    %319 = arith.addf %316, %318 : vector<1x128xf32>
    %320 = vector.broadcast %22 : f32 to vector<1x128xf32>
    %321 = arith.mulf %194, %320 : vector<1x128xf32>
    %322 = vector.broadcast %23 : f32 to vector<1x128xf32>
    %323 = arith.mulf %201, %322 : vector<1x128xf32>
    %324 = arith.addf %321, %323 : vector<1x128xf32>
    %325 = vector.broadcast %24 : f32 to vector<1x128xf32>
    %326 = arith.mulf %208, %325 : vector<1x128xf32>
    %327 = arith.addf %324, %326 : vector<1x128xf32>
    %328 = vector.broadcast %25 : f32 to vector<1x128xf32>
    %329 = arith.mulf %215, %328 : vector<1x128xf32>
    %330 = arith.addf %327, %329 : vector<1x128xf32>
    %331 = vector.broadcast %26 : f32 to vector<1x128xf32>
    %332 = arith.mulf %286, %331 : vector<1x128xf32>
    %333 = arith.addf %330, %332 : vector<1x128xf32>
    %334 = vector.broadcast %27 : f32 to vector<1x128xf32>
    %335 = arith.mulf %297, %334 : vector<1x128xf32>
    %336 = arith.addf %333, %335 : vector<1x128xf32>
    %337 = vector.broadcast %28 : f32 to vector<1x128xf32>
    %338 = arith.mulf %308, %337 : vector<1x128xf32>
    %339 = arith.addf %336, %338 : vector<1x128xf32>
    %340 = vector.broadcast %29 : f32 to vector<1x128xf32>
    %341 = arith.mulf %319, %340 : vector<1x128xf32>
    %342 = arith.addf %339, %341 : vector<1x128xf32>
    %343 = vector.broadcast %30 : f32 to vector<1x128xf32>
    %344 = arith.addf %342, %343 : vector<1x128xf32>
    %345 = arith.negf %344 : vector<1x128xf32>
    %346 = math.exp %345 : vector<1x128xf32>
    %cst_38 = arith.constant 1.000000e+00 : f32
    %347 = vector.broadcast %cst_38 : f32 to vector<1x128xf32>
    %348 = arith.addf %347, %346 : vector<1x128xf32>
    %349 = arith.divf %347, %348 : vector<1x128xf32>
    %350 = arith.mulf %349, %319 : vector<1x128xf32>
    %351 = arith.mulf %350, %319 : vector<1x128xf32>
    %cst_39 = arith.constant 0.000000e+00 : f32
    %352 = arith.subf %cst_39, %20 : f32
    %353 = vector.broadcast %352 : f32 to vector<1x128xf32>
    %354 = arith.mulf %319, %353 : vector<1x128xf32>
    %cst_40 = arith.constant 0.000000e+00 : f32
    %355 = arith.subf %cst_40, %21 : f32
    %356 = vector.broadcast %355 : f32 to vector<1x128xf32>
    %357 = arith.mulf %319, %356 : vector<1x128xf32>
    %358 = vector.broadcast %20 : f32 to vector<1x128xf32>
    %359 = arith.mulf %297, %358 : vector<1x128xf32>
    %360 = vector.broadcast %21 : f32 to vector<1x128xf32>
    %361 = arith.mulf %308, %360 : vector<1x128xf32>
    %362 = arith.addf %359, %361 : vector<1x128xf32>
    %363 = arith.mulf %350, %286 : vector<1x128xf32>
    %364 = arith.subf %362, %363 : vector<1x128xf32>
    %c1_41 = arith.constant 1 : index
    %c0_42 = arith.constant 0 : index
    %365 = vector.load %arg3[%c1_41, %c0_42] : memref<8x128xf32, #tpu.memory_space<vmem>>, vector<1x128xf32>
    %366 = vector.broadcast %31 : f32 to vector<1x128xf32>
    %367 = arith.mulf %365, %366 : vector<1x128xf32>
    %368 = arith.addf %351, %367 : vector<1x128xf32>
    %cst_43 = arith.constant 5.000000e-02 : f32
    %369 = vector.broadcast %cst_43 : f32 to vector<1x128xf32>
    %370 = arith.mulf %369, %368 : vector<1x128xf32>
    %371 = arith.addf %194, %370 : vector<1x128xf32>
    %c1_44 = arith.constant 1 : index
    %c0_45 = arith.constant 0 : index
    %372 = vector.load %arg3[%c1_44, %c0_45] : memref<8x128xf32, #tpu.memory_space<vmem>>, vector<1x128xf32>
    %373 = vector.broadcast %32 : f32 to vector<1x128xf32>
    %374 = arith.mulf %372, %373 : vector<1x128xf32>
    %375 = arith.addf %354, %374 : vector<1x128xf32>
    %cst_46 = arith.constant 5.000000e-02 : f32
    %376 = vector.broadcast %cst_46 : f32 to vector<1x128xf32>
    %377 = arith.mulf %376, %375 : vector<1x128xf32>
    %378 = arith.addf %201, %377 : vector<1x128xf32>
    %c1_47 = arith.constant 1 : index
    %c0_48 = arith.constant 0 : index
    %379 = vector.load %arg3[%c1_47, %c0_48] : memref<8x128xf32, #tpu.memory_space<vmem>>, vector<1x128xf32>
    %380 = vector.broadcast %33 : f32 to vector<1x128xf32>
    %381 = arith.mulf %379, %380 : vector<1x128xf32>
    %382 = arith.addf %357, %381 : vector<1x128xf32>
    %cst_49 = arith.constant 5.000000e-02 : f32
    %383 = vector.broadcast %cst_49 : f32 to vector<1x128xf32>
    %384 = arith.mulf %383, %382 : vector<1x128xf32>
    %385 = arith.addf %208, %384 : vector<1x128xf32>
    %c1_50 = arith.constant 1 : index
    %c0_51 = arith.constant 0 : index
    %386 = vector.load %arg3[%c1_50, %c0_51] : memref<8x128xf32, #tpu.memory_space<vmem>>, vector<1x128xf32>
    %387 = vector.broadcast %34 : f32 to vector<1x128xf32>
    %388 = arith.mulf %386, %387 : vector<1x128xf32>
    %389 = arith.addf %364, %388 : vector<1x128xf32>
    %cst_52 = arith.constant 5.000000e-02 : f32
    %390 = vector.broadcast %cst_52 : f32 to vector<1x128xf32>
    %391 = arith.mulf %390, %389 : vector<1x128xf32>
    %392 = arith.addf %215, %391 : vector<1x128xf32>
    %c8_53 = arith.constant 8 : index
    %c0_54 = arith.constant 0 : index
    %393 = vector.load %arg4[%c8_53, %c0_54] : memref<32x128xf32, #tpu.memory_space<vmem>>, vector<1x128xf32>
    tpu.vector_store %arg4[%c8_53, %c0_54], %371 {strides = array<i32>} : memref<32x128xf32, #tpu.memory_space<vmem>>, vector<1x128xf32>,
    %c9_55 = arith.constant 9 : index
    %c0_56 = arith.constant 0 : index
    %394 = vector.load %arg4[%c9_55, %c0_56] : memref<32x128xf32, #tpu.memory_space<vmem>>, vector<1x128xf32>
    tpu.vector_store %arg4[%c9_55, %c0_56], %378 {strides = array<i32>} : memref<32x128xf32, #tpu.memory_space<vmem>>, vector<1x128xf32>,
    %c10_57 = arith.constant 10 : index
    %c0_58 = arith.constant 0 : index
    %395 = vector.load %arg4[%c10_57, %c0_58] : memref<32x128xf32, #tpu.memory_space<vmem>>, vector<1x128xf32>
    tpu.vector_store %arg4[%c10_57, %c0_58], %385 {strides = array<i32>} : memref<32x128xf32, #tpu.memory_space<vmem>>, vector<1x128xf32>,
    %c11_59 = arith.constant 11 : index
    %c0_60 = arith.constant 0 : index
    %396 = vector.load %arg4[%c11_59, %c0_60] : memref<32x128xf32, #tpu.memory_space<vmem>>, vector<1x128xf32>
    tpu.vector_store %arg4[%c11_59, %c0_60], %392 {strides = array<i32>} : memref<32x128xf32, #tpu.memory_space<vmem>>, vector<1x128xf32>,
    %397 = vector.broadcast %0 : f32 to vector<1x128xf32>
    %398 = arith.mulf %371, %397 : vector<1x128xf32>
    %399 = vector.broadcast %1 : f32 to vector<1x128xf32>
    %400 = arith.mulf %378, %399 : vector<1x128xf32>
    %401 = arith.addf %398, %400 : vector<1x128xf32>
    %402 = vector.broadcast %2 : f32 to vector<1x128xf32>
    %403 = arith.mulf %385, %402 : vector<1x128xf32>
    %404 = arith.addf %401, %403 : vector<1x128xf32>
    %405 = vector.broadcast %3 : f32 to vector<1x128xf32>
    %406 = arith.mulf %392, %405 : vector<1x128xf32>
    %407 = arith.addf %404, %406 : vector<1x128xf32>
    %408 = vector.broadcast %16 : f32 to vector<1x128xf32>
    %409 = arith.addf %407, %408 : vector<1x128xf32>
    %410 = math.tanh %409 : vector<1x128xf32>
    %411 = vector.broadcast %4 : f32 to vector<1x128xf32>
    %412 = arith.mulf %371, %411 : vector<1x128xf32>
    %413 = vector.broadcast %5 : f32 to vector<1x128xf32>
    %414 = arith.mulf %378, %413 : vector<1x128xf32>
    %415 = arith.addf %412, %414 : vector<1x128xf32>
    %416 = vector.broadcast %6 : f32 to vector<1x128xf32>
    %417 = arith.mulf %385, %416 : vector<1x128xf32>
    %418 = arith.addf %415, %417 : vector<1x128xf32>
    %419 = vector.broadcast %7 : f32 to vector<1x128xf32>
    %420 = arith.mulf %392, %419 : vector<1x128xf32>
    %421 = arith.addf %418, %420 : vector<1x128xf32>
    %422 = vector.broadcast %17 : f32 to vector<1x128xf32>
    %423 = arith.addf %421, %422 : vector<1x128xf32>
    %424 = math.tanh %423 : vector<1x128xf32>
    %425 = vector.broadcast %8 : f32 to vector<1x128xf32>
    %426 = arith.mulf %371, %425 : vector<1x128xf32>
    %427 = vector.broadcast %9 : f32 to vector<1x128xf32>
    %428 = arith.mulf %378, %427 : vector<1x128xf32>
    %429 = arith.addf %426, %428 : vector<1x128xf32>
    %430 = vector.broadcast %10 : f32 to vector<1x128xf32>
    %431 = arith.mulf %385, %430 : vector<1x128xf32>
    %432 = arith.addf %429, %431 : vector<1x128xf32>
    %433 = vector.broadcast %11 : f32 to vector<1x128xf32>
    %434 = arith.mulf %392, %433 : vector<1x128xf32>
    %435 = arith.addf %432, %434 : vector<1x128xf32>
    %436 = vector.broadcast %18 : f32 to vector<1x128xf32>
    %437 = arith.addf %435, %436 : vector<1x128xf32>
    %438 = math.tanh %437 : vector<1x128xf32>
    %439 = vector.broadcast %12 : f32 to vector<1x128xf32>
    %440 = arith.mulf %371, %439 : vector<1x128xf32>
    %441 = vector.broadcast %13 : f32 to vector<1x128xf32>
    %442 = arith.mulf %378, %441 : vector<1x128xf32>
    %443 = arith.addf %440, %442 : vector<1x128xf32>
    %444 = vector.broadcast %14 : f32 to vector<1x128xf32>
    %445 = arith.mulf %385, %444 : vector<1x128xf32>
    %446 = arith.addf %443, %445 : vector<1x128xf32>
    %447 = vector.broadcast %15 : f32 to vector<1x128xf32>
    %448 = arith.mulf %392, %447 : vector<1x128xf32>
    %449 = arith.addf %446, %448 : vector<1x128xf32>
    %450 = vector.broadcast %19 : f32 to vector<1x128xf32>
    %451 = arith.addf %449, %450 : vector<1x128xf32>
    %452 = math.tanh %451 : vector<1x128xf32>
    %453 = vector.broadcast %0 : f32 to vector<1x128xf32>
    %454 = arith.mulf %410, %453 : vector<1x128xf32>
    %455 = vector.broadcast %4 : f32 to vector<1x128xf32>
    %456 = arith.mulf %424, %455 : vector<1x128xf32>
    %457 = arith.addf %454, %456 : vector<1x128xf32>
    %458 = vector.broadcast %8 : f32 to vector<1x128xf32>
    %459 = arith.mulf %438, %458 : vector<1x128xf32>
    %460 = arith.addf %457, %459 : vector<1x128xf32>
    %461 = vector.broadcast %12 : f32 to vector<1x128xf32>
    %462 = arith.mulf %452, %461 : vector<1x128xf32>
    %463 = arith.addf %460, %462 : vector<1x128xf32>
    %464 = vector.broadcast %1 : f32 to vector<1x128xf32>
    %465 = arith.mulf %410, %464 : vector<1x128xf32>
    %466 = vector.broadcast %5 : f32 to vector<1x128xf32>
    %467 = arith.mulf %424, %466 : vector<1x128xf32>
    %468 = arith.addf %465, %467 : vector<1x128xf32>
    %469 = vector.broadcast %9 : f32 to vector<1x128xf32>
    %470 = arith.mulf %438, %469 : vector<1x128xf32>
    %471 = arith.addf %468, %470 : vector<1x128xf32>
    %472 = vector.broadcast %13 : f32 to vector<1x128xf32>
    %473 = arith.mulf %452, %472 : vector<1x128xf32>
    %474 = arith.addf %471, %473 : vector<1x128xf32>
    %475 = vector.broadcast %2 : f32 to vector<1x128xf32>
    %476 = arith.mulf %410, %475 : vector<1x128xf32>
    %477 = vector.broadcast %6 : f32 to vector<1x128xf32>
    %478 = arith.mulf %424, %477 : vector<1x128xf32>
    %479 = arith.addf %476, %478 : vector<1x128xf32>
    %480 = vector.broadcast %10 : f32 to vector<1x128xf32>
    %481 = arith.mulf %438, %480 : vector<1x128xf32>
    %482 = arith.addf %479, %481 : vector<1x128xf32>
    %483 = vector.broadcast %14 : f32 to vector<1x128xf32>
    %484 = arith.mulf %452, %483 : vector<1x128xf32>
    %485 = arith.addf %482, %484 : vector<1x128xf32>
    %486 = vector.broadcast %3 : f32 to vector<1x128xf32>
    %487 = arith.mulf %410, %486 : vector<1x128xf32>
    %488 = vector.broadcast %7 : f32 to vector<1x128xf32>
    %489 = arith.mulf %424, %488 : vector<1x128xf32>
    %490 = arith.addf %487, %489 : vector<1x128xf32>
    %491 = vector.broadcast %11 : f32 to vector<1x128xf32>
    %492 = arith.mulf %438, %491 : vector<1x128xf32>
    %493 = arith.addf %490, %492 : vector<1x128xf32>
    %494 = vector.broadcast %15 : f32 to vector<1x128xf32>
    %495 = arith.mulf %452, %494 : vector<1x128xf32>
    %496 = arith.addf %493, %495 : vector<1x128xf32>
    %497 = vector.broadcast %22 : f32 to vector<1x128xf32>
    %498 = arith.mulf %371, %497 : vector<1x128xf32>
    %499 = vector.broadcast %23 : f32 to vector<1x128xf32>
    %500 = arith.mulf %378, %499 : vector<1x128xf32>
    %501 = arith.addf %498, %500 : vector<1x128xf32>
    %502 = vector.broadcast %24 : f32 to vector<1x128xf32>
    %503 = arith.mulf %385, %502 : vector<1x128xf32>
    %504 = arith.addf %501, %503 : vector<1x128xf32>
    %505 = vector.broadcast %25 : f32 to vector<1x128xf32>
    %506 = arith.mulf %392, %505 : vector<1x128xf32>
    %507 = arith.addf %504, %506 : vector<1x128xf32>
    %508 = vector.broadcast %26 : f32 to vector<1x128xf32>
    %509 = arith.mulf %463, %508 : vector<1x128xf32>
    %510 = arith.addf %507, %509 : vector<1x128xf32>
    %511 = vector.broadcast %27 : f32 to vector<1x128xf32>
    %512 = arith.mulf %474, %511 : vector<1x128xf32>
    %513 = arith.addf %510, %512 : vector<1x128xf32>
    %514 = vector.broadcast %28 : f32 to vector<1x128xf32>
    %515 = arith.mulf %485, %514 : vector<1x128xf32>
    %516 = arith.addf %513, %515 : vector<1x128xf32>
    %517 = vector.broadcast %29 : f32 to vector<1x128xf32>
    %518 = arith.mulf %496, %517 : vector<1x128xf32>
    %519 = arith.addf %516, %518 : vector<1x128xf32>
    %520 = vector.broadcast %30 : f32 to vector<1x128xf32>
    %521 = arith.addf %519, %520 : vector<1x128xf32>
    %522 = arith.negf %521 : vector<1x128xf32>
    %523 = math.exp %522 : vector<1x128xf32>
    %cst_61 = arith.constant 1.000000e+00 : f32
    %524 = vector.broadcast %cst_61 : f32 to vector<1x128xf32>
    %525 = arith.addf %524, %523 : vector<1x128xf32>
    %526 = arith.divf %524, %525 : vector<1x128xf32>
    %527 = arith.mulf %526, %496 : vector<1x128xf32>
    %528 = arith.mulf %527, %496 : vector<1x128xf32>
    %cst_62 = arith.constant 0.000000e+00 : f32
    %529 = arith.subf %cst_62, %20 : f32
    %530 = vector.broadcast %529 : f32 to vector<1x128xf32>
    %531 = arith.mulf %496, %530 : vector<1x128xf32>
    %cst_63 = arith.constant 0.000000e+00 : f32
    %532 = arith.subf %cst_63, %21 : f32
    %533 = vector.broadcast %532 : f32 to vector<1x128xf32>
    %534 = arith.mulf %496, %533 : vector<1x128xf32>
    %535 = vector.broadcast %20 : f32 to vector<1x128xf32>
    %536 = arith.mulf %474, %535 : vector<1x128xf32>
    %537 = vector.broadcast %21 : f32 to vector<1x128xf32>
    %538 = arith.mulf %485, %537 : vector<1x128xf32>
    %539 = arith.addf %536, %538 : vector<1x128xf32>
    %540 = arith.mulf %527, %463 : vector<1x128xf32>
    %541 = arith.subf %539, %540 : vector<1x128xf32>
    %c2_64 = arith.constant 2 : index
    %c0_65 = arith.constant 0 : index
    %542 = vector.load %arg3[%c2_64, %c0_65] : memref<8x128xf32, #tpu.memory_space<vmem>>, vector<1x128xf32>
    %543 = vector.broadcast %31 : f32 to vector<1x128xf32>
    %544 = arith.mulf %542, %543 : vector<1x128xf32>
    %545 = arith.addf %528, %544 : vector<1x128xf32>
    %cst_66 = arith.constant 5.000000e-02 : f32
    %546 = vector.broadcast %cst_66 : f32 to vector<1x128xf32>
    %547 = arith.mulf %546, %545 : vector<1x128xf32>
    %548 = arith.addf %371, %547 : vector<1x128xf32>
    %c2_67 = arith.constant 2 : index
    %c0_68 = arith.constant 0 : index
    %549 = vector.load %arg3[%c2_67, %c0_68] : memref<8x128xf32, #tpu.memory_space<vmem>>, vector<1x128xf32>
    %550 = vector.broadcast %32 : f32 to vector<1x128xf32>
    %551 = arith.mulf %549, %550 : vector<1x128xf32>
    %552 = arith.addf %531, %551 : vector<1x128xf32>
    %cst_69 = arith.constant 5.000000e-02 : f32
    %553 = vector.broadcast %cst_69 : f32 to vector<1x128xf32>
    %554 = arith.mulf %553, %552 : vector<1x128xf32>
    %555 = arith.addf %378, %554 : vector<1x128xf32>
    %c2_70 = arith.constant 2 : index
    %c0_71 = arith.constant 0 : index
    %556 = vector.load %arg3[%c2_70, %c0_71] : memref<8x128xf32, #tpu.memory_space<vmem>>, vector<1x128xf32>
    %557 = vector.broadcast %33 : f32 to vector<1x128xf32>
    %558 = arith.mulf %556, %557 : vector<1x128xf32>
    %559 = arith.addf %534, %558 : vector<1x128xf32>
    %cst_72 = arith.constant 5.000000e-02 : f32
    %560 = vector.broadcast %cst_72 : f32 to vector<1x128xf32>
    %561 = arith.mulf %560, %559 : vector<1x128xf32>
    %562 = arith.addf %385, %561 : vector<1x128xf32>
    %c2_73 = arith.constant 2 : index
    %c0_74 = arith.constant 0 : index
    %563 = vector.load %arg3[%c2_73, %c0_74] : memref<8x128xf32, #tpu.memory_space<vmem>>, vector<1x128xf32>
    %564 = vector.broadcast %34 : f32 to vector<1x128xf32>
    %565 = arith.mulf %563, %564 : vector<1x128xf32>
    %566 = arith.addf %541, %565 : vector<1x128xf32>
    %cst_75 = arith.constant 5.000000e-02 : f32
    %567 = vector.broadcast %cst_75 : f32 to vector<1x128xf32>
    %568 = arith.mulf %567, %566 : vector<1x128xf32>
    %569 = arith.addf %392, %568 : vector<1x128xf32>
    %c12_76 = arith.constant 12 : index
    %c0_77 = arith.constant 0 : index
    %570 = vector.load %arg4[%c12_76, %c0_77] : memref<32x128xf32, #tpu.memory_space<vmem>>, vector<1x128xf32>
    tpu.vector_store %arg4[%c12_76, %c0_77], %548 {strides = array<i32>} : memref<32x128xf32, #tpu.memory_space<vmem>>, vector<1x128xf32>,
    %c13_78 = arith.constant 13 : index
    %c0_79 = arith.constant 0 : index
    %571 = vector.load %arg4[%c13_78, %c0_79] : memref<32x128xf32, #tpu.memory_space<vmem>>, vector<1x128xf32>
    tpu.vector_store %arg4[%c13_78, %c0_79], %555 {strides = array<i32>} : memref<32x128xf32, #tpu.memory_space<vmem>>, vector<1x128xf32>,
    %c14_80 = arith.constant 14 : index
    %c0_81 = arith.constant 0 : index
    %572 = vector.load %arg4[%c14_80, %c0_81] : memref<32x128xf32, #tpu.memory_space<vmem>>, vector<1x128xf32>
    tpu.vector_store %arg4[%c14_80, %c0_81], %562 {strides = array<i32>} : memref<32x128xf32, #tpu.memory_space<vmem>>, vector<1x128xf32>,
    %c15_82 = arith.constant 15 : index
    %c0_83 = arith.constant 0 : index
    %573 = vector.load %arg4[%c15_82, %c0_83] : memref<32x128xf32, #tpu.memory_space<vmem>>, vector<1x128xf32>
    tpu.vector_store %arg4[%c15_82, %c0_83], %569 {strides = array<i32>} : memref<32x128xf32, #tpu.memory_space<vmem>>, vector<1x128xf32>,
    %574 = vector.broadcast %0 : f32 to vector<1x128xf32>
    %575 = arith.mulf %548, %574 : vector<1x128xf32>
    %576 = vector.broadcast %1 : f32 to vector<1x128xf32>
    %577 = arith.mulf %555, %576 : vector<1x128xf32>
    %578 = arith.addf %575, %577 : vector<1x128xf32>
    %579 = vector.broadcast %2 : f32 to vector<1x128xf32>
    %580 = arith.mulf %562, %579 : vector<1x128xf32>
    %581 = arith.addf %578, %580 : vector<1x128xf32>
    %582 = vector.broadcast %3 : f32 to vector<1x128xf32>
    %583 = arith.mulf %569, %582 : vector<1x128xf32>
    %584 = arith.addf %581, %583 : vector<1x128xf32>
    %585 = vector.broadcast %16 : f32 to vector<1x128xf32>
    %586 = arith.addf %584, %585 : vector<1x128xf32>
    %587 = math.tanh %586 : vector<1x128xf32>
    %588 = vector.broadcast %4 : f32 to vector<1x128xf32>
    %589 = arith.mulf %548, %588 : vector<1x128xf32>
    %590 = vector.broadcast %5 : f32 to vector<1x128xf32>
    %591 = arith.mulf %555, %590 : vector<1x128xf32>
    %592 = arith.addf %589, %591 : vector<1x128xf32>
    %593 = vector.broadcast %6 : f32 to vector<1x128xf32>
    %594 = arith.mulf %562, %593 : vector<1x128xf32>
    %595 = arith.addf %592, %594 : vector<1x128xf32>
    %596 = vector.broadcast %7 : f32 to vector<1x128xf32>
    %597 = arith.mulf %569, %596 : vector<1x128xf32>
    %598 = arith.addf %595, %597 : vector<1x128xf32>
    %599 = vector.broadcast %17 : f32 to vector<1x128xf32>
    %600 = arith.addf %598, %599 : vector<1x128xf32>
    %601 = math.tanh %600 : vector<1x128xf32>
    %602 = vector.broadcast %8 : f32 to vector<1x128xf32>
    %603 = arith.mulf %548, %602 : vector<1x128xf32>
    %604 = vector.broadcast %9 : f32 to vector<1x128xf32>
    %605 = arith.mulf %555, %604 : vector<1x128xf32>
    %606 = arith.addf %603, %605 : vector<1x128xf32>
    %607 = vector.broadcast %10 : f32 to vector<1x128xf32>
    %608 = arith.mulf %562, %607 : vector<1x128xf32>
    %609 = arith.addf %606, %608 : vector<1x128xf32>
    %610 = vector.broadcast %11 : f32 to vector<1x128xf32>
    %611 = arith.mulf %569, %610 : vector<1x128xf32>
    %612 = arith.addf %609, %611 : vector<1x128xf32>
    %613 = vector.broadcast %18 : f32 to vector<1x128xf32>
    %614 = arith.addf %612, %613 : vector<1x128xf32>
    %615 = math.tanh %614 : vector<1x128xf32>
    %616 = vector.broadcast %12 : f32 to vector<1x128xf32>
    %617 = arith.mulf %548, %616 : vector<1x128xf32>
    %618 = vector.broadcast %13 : f32 to vector<1x128xf32>
    %619 = arith.mulf %555, %618 : vector<1x128xf32>
    %620 = arith.addf %617, %619 : vector<1x128xf32>
    %621 = vector.broadcast %14 : f32 to vector<1x128xf32>
    %622 = arith.mulf %562, %621 : vector<1x128xf32>
    %623 = arith.addf %620, %622 : vector<1x128xf32>
    %624 = vector.broadcast %15 : f32 to vector<1x128xf32>
    %625 = arith.mulf %569, %624 : vector<1x128xf32>
    %626 = arith.addf %623, %625 : vector<1x128xf32>
    %627 = vector.broadcast %19 : f32 to vector<1x128xf32>
    %628 = arith.addf %626, %627 : vector<1x128xf32>
    %629 = math.tanh %628 : vector<1x128xf32>
    %630 = vector.broadcast %0 : f32 to vector<1x128xf32>
    %631 = arith.mulf %587, %630 : vector<1x128xf32>
    %632 = vector.broadcast %4 : f32 to vector<1x128xf32>
    %633 = arith.mulf %601, %632 : vector<1x128xf32>
    %634 = arith.addf %631, %633 : vector<1x128xf32>
    %635 = vector.broadcast %8 : f32 to vector<1x128xf32>
    %636 = arith.mulf %615, %635 : vector<1x128xf32>
    %637 = arith.addf %634, %636 : vector<1x128xf32>
    %638 = vector.broadcast %12 : f32 to vector<1x128xf32>
    %639 = arith.mulf %629, %638 : vector<1x128xf32>
    %640 = arith.addf %637, %639 : vector<1x128xf32>
    %641 = vector.broadcast %1 : f32 to vector<1x128xf32>
    %642 = arith.mulf %587, %641 : vector<1x128xf32>
    %643 = vector.broadcast %5 : f32 to vector<1x128xf32>
    %644 = arith.mulf %601, %643 : vector<1x128xf32>
    %645 = arith.addf %642, %644 : vector<1x128xf32>
    %646 = vector.broadcast %9 : f32 to vector<1x128xf32>
    %647 = arith.mulf %615, %646 : vector<1x128xf32>
    %648 = arith.addf %645, %647 : vector<1x128xf32>
    %649 = vector.broadcast %13 : f32 to vector<1x128xf32>
    %650 = arith.mulf %629, %649 : vector<1x128xf32>
    %651 = arith.addf %648, %650 : vector<1x128xf32>
    %652 = vector.broadcast %2 : f32 to vector<1x128xf32>
    %653 = arith.mulf %587, %652 : vector<1x128xf32>
    %654 = vector.broadcast %6 : f32 to vector<1x128xf32>
    %655 = arith.mulf %601, %654 : vector<1x128xf32>
    %656 = arith.addf %653, %655 : vector<1x128xf32>
    %657 = vector.broadcast %10 : f32 to vector<1x128xf32>
    %658 = arith.mulf %615, %657 : vector<1x128xf32>
    %659 = arith.addf %656, %658 : vector<1x128xf32>
    %660 = vector.broadcast %14 : f32 to vector<1x128xf32>
    %661 = arith.mulf %629, %660 : vector<1x128xf32>
    %662 = arith.addf %659, %661 : vector<1x128xf32>
    %663 = vector.broadcast %3 : f32 to vector<1x128xf32>
    %664 = arith.mulf %587, %663 : vector<1x128xf32>
    %665 = vector.broadcast %7 : f32 to vector<1x128xf32>
    %666 = arith.mulf %601, %665 : vector<1x128xf32>
    %667 = arith.addf %664, %666 : vector<1x128xf32>
    %668 = vector.broadcast %11 : f32 to vector<1x128xf32>
    %669 = arith.mulf %615, %668 : vector<1x128xf32>
    %670 = arith.addf %667, %669 : vector<1x128xf32>
    %671 = vector.broadcast %15 : f32 to vector<1x128xf32>
    %672 = arith.mulf %629, %671 : vector<1x128xf32>
    %673 = arith.addf %670, %672 : vector<1x128xf32>
    %674 = vector.broadcast %22 : f32 to vector<1x128xf32>
    %675 = arith.mulf %548, %674 : vector<1x128xf32>
    %676 = vector.broadcast %23 : f32 to vector<1x128xf32>
    %677 = arith.mulf %555, %676 : vector<1x128xf32>
    %678 = arith.addf %675, %677 : vector<1x128xf32>
    %679 = vector.broadcast %24 : f32 to vector<1x128xf32>
    %680 = arith.mulf %562, %679 : vector<1x128xf32>
    %681 = arith.addf %678, %680 : vector<1x128xf32>
    %682 = vector.broadcast %25 : f32 to vector<1x128xf32>
    %683 = arith.mulf %569, %682 : vector<1x128xf32>
    %684 = arith.addf %681, %683 : vector<1x128xf32>
    %685 = vector.broadcast %26 : f32 to vector<1x128xf32>
    %686 = arith.mulf %640, %685 : vector<1x128xf32>
    %687 = arith.addf %684, %686 : vector<1x128xf32>
    %688 = vector.broadcast %27 : f32 to vector<1x128xf32>
    %689 = arith.mulf %651, %688 : vector<1x128xf32>
    %690 = arith.addf %687, %689 : vector<1x128xf32>
    %691 = vector.broadcast %28 : f32 to vector<1x128xf32>
    %692 = arith.mulf %662, %691 : vector<1x128xf32>
    %693 = arith.addf %690, %692 : vector<1x128xf32>
    %694 = vector.broadcast %29 : f32 to vector<1x128xf32>
    %695 = arith.mulf %673, %694 : vector<1x128xf32>
    %696 = arith.addf %693, %695 : vector<1x128xf32>
    %697 = vector.broadcast %30 : f32 to vector<1x128xf32>
    %698 = arith.addf %696, %697 : vector<1x128xf32>
    %699 = arith.negf %698 : vector<1x128xf32>
    %700 = math.exp %699 : vector<1x128xf32>
    %cst_84 = arith.constant 1.000000e+00 : f32
    %701 = vector.broadcast %cst_84 : f32 to vector<1x128xf32>
    %702 = arith.addf %701, %700 : vector<1x128xf32>
    %703 = arith.divf %701, %702 : vector<1x128xf32>
    %704 = arith.mulf %703, %673 : vector<1x128xf32>
    %705 = arith.mulf %704, %673 : vector<1x128xf32>
    %cst_85 = arith.constant 0.000000e+00 : f32
    %706 = arith.subf %cst_85, %20 : f32
    %707 = vector.broadcast %706 : f32 to vector<1x128xf32>
    %708 = arith.mulf %673, %707 : vector<1x128xf32>
    %cst_86 = arith.constant 0.000000e+00 : f32
    %709 = arith.subf %cst_86, %21 : f32
    %710 = vector.broadcast %709 : f32 to vector<1x128xf32>
    %711 = arith.mulf %673, %710 : vector<1x128xf32>
    %712 = vector.broadcast %20 : f32 to vector<1x128xf32>
    %713 = arith.mulf %651, %712 : vector<1x128xf32>
    %714 = vector.broadcast %21 : f32 to vector<1x128xf32>
    %715 = arith.mulf %662, %714 : vector<1x128xf32>
    %716 = arith.addf %713, %715 : vector<1x128xf32>
    %717 = arith.mulf %704, %640 : vector<1x128xf32>
    %718 = arith.subf %716, %717 : vector<1x128xf32>
    %c3_87 = arith.constant 3 : index
    %c0_88 = arith.constant 0 : index
    %719 = vector.load %arg3[%c3_87, %c0_88] : memref<8x128xf32, #tpu.memory_space<vmem>>, vector<1x128xf32>
    %720 = vector.broadcast %31 : f32 to vector<1x128xf32>
    %721 = arith.mulf %719, %720 : vector<1x128xf32>
    %722 = arith.addf %705, %721 : vector<1x128xf32>
    %cst_89 = arith.constant 5.000000e-02 : f32
    %723 = vector.broadcast %cst_89 : f32 to vector<1x128xf32>
    %724 = arith.mulf %723, %722 : vector<1x128xf32>
    %725 = arith.addf %548, %724 : vector<1x128xf32>
    %c3_90 = arith.constant 3 : index
    %c0_91 = arith.constant 0 : index
    %726 = vector.load %arg3[%c3_90, %c0_91] : memref<8x128xf32, #tpu.memory_space<vmem>>, vector<1x128xf32>
    %727 = vector.broadcast %32 : f32 to vector<1x128xf32>
    %728 = arith.mulf %726, %727 : vector<1x128xf32>
    %729 = arith.addf %708, %728 : vector<1x128xf32>
    %cst_92 = arith.constant 5.000000e-02 : f32
    %730 = vector.broadcast %cst_92 : f32 to vector<1x128xf32>
    %731 = arith.mulf %730, %729 : vector<1x128xf32>
    %732 = arith.addf %555, %731 : vector<1x128xf32>
    %c3_93 = arith.constant 3 : index
    %c0_94 = arith.constant 0 : index
    %733 = vector.load %arg3[%c3_93, %c0_94] : memref<8x128xf32, #tpu.memory_space<vmem>>, vector<1x128xf32>
    %734 = vector.broadcast %33 : f32 to vector<1x128xf32>
    %735 = arith.mulf %733, %734 : vector<1x128xf32>
    %736 = arith.addf %711, %735 : vector<1x128xf32>
    %cst_95 = arith.constant 5.000000e-02 : f32
    %737 = vector.broadcast %cst_95 : f32 to vector<1x128xf32>
    %738 = arith.mulf %737, %736 : vector<1x128xf32>
    %739 = arith.addf %562, %738 : vector<1x128xf32>
    %c3_96 = arith.constant 3 : index
    %c0_97 = arith.constant 0 : index
    %740 = vector.load %arg3[%c3_96, %c0_97] : memref<8x128xf32, #tpu.memory_space<vmem>>, vector<1x128xf32>
    %741 = vector.broadcast %34 : f32 to vector<1x128xf32>
    %742 = arith.mulf %740, %741 : vector<1x128xf32>
    %743 = arith.addf %718, %742 : vector<1x128xf32>
    %cst_98 = arith.constant 5.000000e-02 : f32
    %744 = vector.broadcast %cst_98 : f32 to vector<1x128xf32>
    %745 = arith.mulf %744, %743 : vector<1x128xf32>
    %746 = arith.addf %569, %745 : vector<1x128xf32>
    %c16_99 = arith.constant 16 : index
    %c0_100 = arith.constant 0 : index
    %747 = vector.load %arg4[%c16_99, %c0_100] : memref<32x128xf32, #tpu.memory_space<vmem>>, vector<1x128xf32>
    tpu.vector_store %arg4[%c16_99, %c0_100], %725 {strides = array<i32>} : memref<32x128xf32, #tpu.memory_space<vmem>>, vector<1x128xf32>,
    %c17_101 = arith.constant 17 : index
    %c0_102 = arith.constant 0 : index
    %748 = vector.load %arg4[%c17_101, %c0_102] : memref<32x128xf32, #tpu.memory_space<vmem>>, vector<1x128xf32>
    tpu.vector_store %arg4[%c17_101, %c0_102], %732 {strides = array<i32>} : memref<32x128xf32, #tpu.memory_space<vmem>>, vector<1x128xf32>,
    %c18_103 = arith.constant 18 : index
    %c0_104 = arith.constant 0 : index
    %749 = vector.load %arg4[%c18_103, %c0_104] : memref<32x128xf32, #tpu.memory_space<vmem>>, vector<1x128xf32>
    tpu.vector_store %arg4[%c18_103, %c0_104], %739 {strides = array<i32>} : memref<32x128xf32, #tpu.memory_space<vmem>>, vector<1x128xf32>,
    %c19_105 = arith.constant 19 : index
    %c0_106 = arith.constant 0 : index
    %750 = vector.load %arg4[%c19_105, %c0_106] : memref<32x128xf32, #tpu.memory_space<vmem>>, vector<1x128xf32>
    tpu.vector_store %arg4[%c19_105, %c0_106], %746 {strides = array<i32>} : memref<32x128xf32, #tpu.memory_space<vmem>>, vector<1x128xf32>,
    %751 = vector.broadcast %0 : f32 to vector<1x128xf32>
    %752 = arith.mulf %725, %751 : vector<1x128xf32>
    %753 = vector.broadcast %1 : f32 to vector<1x128xf32>
    %754 = arith.mulf %732, %753 : vector<1x128xf32>
    %755 = arith.addf %752, %754 : vector<1x128xf32>
    %756 = vector.broadcast %2 : f32 to vector<1x128xf32>
    %757 = arith.mulf %739, %756 : vector<1x128xf32>
    %758 = arith.addf %755, %757 : vector<1x128xf32>
    %759 = vector.broadcast %3 : f32 to vector<1x128xf32>
    %760 = arith.mulf %746, %759 : vector<1x128xf32>
    %761 = arith.addf %758, %760 : vector<1x128xf32>
    %762 = vector.broadcast %16 : f32 to vector<1x128xf32>
    %763 = arith.addf %761, %762 : vector<1x128xf32>
    %764 = math.tanh %763 : vector<1x128xf32>
    %765 = vector.broadcast %4 : f32 to vector<1x128xf32>
    %766 = arith.mulf %725, %765 : vector<1x128xf32>
    %767 = vector.broadcast %5 : f32 to vector<1x128xf32>
    %768 = arith.mulf %732, %767 : vector<1x128xf32>
    %769 = arith.addf %766, %768 : vector<1x128xf32>
    %770 = vector.broadcast %6 : f32 to vector<1x128xf32>
    %771 = arith.mulf %739, %770 : vector<1x128xf32>
    %772 = arith.addf %769, %771 : vector<1x128xf32>
    %773 = vector.broadcast %7 : f32 to vector<1x128xf32>
    %774 = arith.mulf %746, %773 : vector<1x128xf32>
    %775 = arith.addf %772, %774 : vector<1x128xf32>
    %776 = vector.broadcast %17 : f32 to vector<1x128xf32>
    %777 = arith.addf %775, %776 : vector<1x128xf32>
    %778 = math.tanh %777 : vector<1x128xf32>
    %779 = vector.broadcast %8 : f32 to vector<1x128xf32>
    %780 = arith.mulf %725, %779 : vector<1x128xf32>
    %781 = vector.broadcast %9 : f32 to vector<1x128xf32>
    %782 = arith.mulf %732, %781 : vector<1x128xf32>
    %783 = arith.addf %780, %782 : vector<1x128xf32>
    %784 = vector.broadcast %10 : f32 to vector<1x128xf32>
    %785 = arith.mulf %739, %784 : vector<1x128xf32>
    %786 = arith.addf %783, %785 : vector<1x128xf32>
    %787 = vector.broadcast %11 : f32 to vector<1x128xf32>
    %788 = arith.mulf %746, %787 : vector<1x128xf32>
    %789 = arith.addf %786, %788 : vector<1x128xf32>
    %790 = vector.broadcast %18 : f32 to vector<1x128xf32>
    %791 = arith.addf %789, %790 : vector<1x128xf32>
    %792 = math.tanh %791 : vector<1x128xf32>
    %793 = vector.broadcast %12 : f32 to vector<1x128xf32>
    %794 = arith.mulf %725, %793 : vector<1x128xf32>
    %795 = vector.broadcast %13 : f32 to vector<1x128xf32>
    %796 = arith.mulf %732, %795 : vector<1x128xf32>
    %797 = arith.addf %794, %796 : vector<1x128xf32>
    %798 = vector.broadcast %14 : f32 to vector<1x128xf32>
    %799 = arith.mulf %739, %798 : vector<1x128xf32>
    %800 = arith.addf %797, %799 : vector<1x128xf32>
    %801 = vector.broadcast %15 : f32 to vector<1x128xf32>
    %802 = arith.mulf %746, %801 : vector<1x128xf32>
    %803 = arith.addf %800, %802 : vector<1x128xf32>
    %804 = vector.broadcast %19 : f32 to vector<1x128xf32>
    %805 = arith.addf %803, %804 : vector<1x128xf32>
    %806 = math.tanh %805 : vector<1x128xf32>
    %807 = vector.broadcast %0 : f32 to vector<1x128xf32>
    %808 = arith.mulf %764, %807 : vector<1x128xf32>
    %809 = vector.broadcast %4 : f32 to vector<1x128xf32>
    %810 = arith.mulf %778, %809 : vector<1x128xf32>
    %811 = arith.addf %808, %810 : vector<1x128xf32>
    %812 = vector.broadcast %8 : f32 to vector<1x128xf32>
    %813 = arith.mulf %792, %812 : vector<1x128xf32>
    %814 = arith.addf %811, %813 : vector<1x128xf32>
    %815 = vector.broadcast %12 : f32 to vector<1x128xf32>
    %816 = arith.mulf %806, %815 : vector<1x128xf32>
    %817 = arith.addf %814, %816 : vector<1x128xf32>
    %818 = vector.broadcast %1 : f32 to vector<1x128xf32>
    %819 = arith.mulf %764, %818 : vector<1x128xf32>
    %820 = vector.broadcast %5 : f32 to vector<1x128xf32>
    %821 = arith.mulf %778, %820 : vector<1x128xf32>
    %822 = arith.addf %819, %821 : vector<1x128xf32>
    %823 = vector.broadcast %9 : f32 to vector<1x128xf32>
    %824 = arith.mulf %792, %823 : vector<1x128xf32>
    %825 = arith.addf %822, %824 : vector<1x128xf32>
    %826 = vector.broadcast %13 : f32 to vector<1x128xf32>
    %827 = arith.mulf %806, %826 : vector<1x128xf32>
    %828 = arith.addf %825, %827 : vector<1x128xf32>
    %829 = vector.broadcast %2 : f32 to vector<1x128xf32>
    %830 = arith.mulf %764, %829 : vector<1x128xf32>
    %831 = vector.broadcast %6 : f32 to vector<1x128xf32>
    %832 = arith.mulf %778, %831 : vector<1x128xf32>
    %833 = arith.addf %830, %832 : vector<1x128xf32>
    %834 = vector.broadcast %10 : f32 to vector<1x128xf32>
    %835 = arith.mulf %792, %834 : vector<1x128xf32>
    %836 = arith.addf %833, %835 : vector<1x128xf32>
    %837 = vector.broadcast %14 : f32 to vector<1x128xf32>
    %838 = arith.mulf %806, %837 : vector<1x128xf32>
    %839 = arith.addf %836, %838 : vector<1x128xf32>
    %840 = vector.broadcast %3 : f32 to vector<1x128xf32>
    %841 = arith.mulf %764, %840 : vector<1x128xf32>
    %842 = vector.broadcast %7 : f32 to vector<1x128xf32>
    %843 = arith.mulf %778, %842 : vector<1x128xf32>
    %844 = arith.addf %841, %843 : vector<1x128xf32>
    %845 = vector.broadcast %11 : f32 to vector<1x128xf32>
    %846 = arith.mulf %792, %845 : vector<1x128xf32>
    %847 = arith.addf %844, %846 : vector<1x128xf32>
    %848 = vector.broadcast %15 : f32 to vector<1x128xf32>
    %849 = arith.mulf %806, %848 : vector<1x128xf32>
    %850 = arith.addf %847, %849 : vector<1x128xf32>
    %851 = vector.broadcast %22 : f32 to vector<1x128xf32>
    %852 = arith.mulf %725, %851 : vector<1x128xf32>
    %853 = vector.broadcast %23 : f32 to vector<1x128xf32>
    %854 = arith.mulf %732, %853 : vector<1x128xf32>
    %855 = arith.addf %852, %854 : vector<1x128xf32>
    %856 = vector.broadcast %24 : f32 to vector<1x128xf32>
    %857 = arith.mulf %739, %856 : vector<1x128xf32>
    %858 = arith.addf %855, %857 : vector<1x128xf32>
    %859 = vector.broadcast %25 : f32 to vector<1x128xf32>
    %860 = arith.mulf %746, %859 : vector<1x128xf32>
    %861 = arith.addf %858, %860 : vector<1x128xf32>
    %862 = vector.broadcast %26 : f32 to vector<1x128xf32>
    %863 = arith.mulf %817, %862 : vector<1x128xf32>
    %864 = arith.addf %861, %863 : vector<1x128xf32>
    %865 = vector.broadcast %27 : f32 to vector<1x128xf32>
    %866 = arith.mulf %828, %865 : vector<1x128xf32>
    %867 = arith.addf %864, %866 : vector<1x128xf32>
    %868 = vector.broadcast %28 : f32 to vector<1x128xf32>
    %869 = arith.mulf %839, %868 : vector<1x128xf32>
    %870 = arith.addf %867, %869 : vector<1x128xf32>
    %871 = vector.broadcast %29 : f32 to vector<1x128xf32>
    %872 = arith.mulf %850, %871 : vector<1x128xf32>
    %873 = arith.addf %870, %872 : vector<1x128xf32>
    %874 = vector.broadcast %30 : f32 to vector<1x128xf32>
    %875 = arith.addf %873, %874 : vector<1x128xf32>
    %876 = arith.negf %875 : vector<1x128xf32>
    %877 = math.exp %876 : vector<1x128xf32>
    %cst_107 = arith.constant 1.000000e+00 : f32
    %878 = vector.broadcast %cst_107 : f32 to vector<1x128xf32>
    %879 = arith.addf %878, %877 : vector<1x128xf32>
    %880 = arith.divf %878, %879 : vector<1x128xf32>
    %881 = arith.mulf %880, %850 : vector<1x128xf32>
    %882 = arith.mulf %881, %850 : vector<1x128xf32>
    %cst_108 = arith.constant 0.000000e+00 : f32
    %883 = arith.subf %cst_108, %20 : f32
    %884 = vector.broadcast %883 : f32 to vector<1x128xf32>
    %885 = arith.mulf %850, %884 : vector<1x128xf32>
    %cst_109 = arith.constant 0.000000e+00 : f32
    %886 = arith.subf %cst_109, %21 : f32
    %887 = vector.broadcast %886 : f32 to vector<1x128xf32>
    %888 = arith.mulf %850, %887 : vector<1x128xf32>
    %889 = vector.broadcast %20 : f32 to vector<1x128xf32>
    %890 = arith.mulf %828, %889 : vector<1x128xf32>
    %891 = vector.broadcast %21 : f32 to vector<1x128xf32>
    %892 = arith.mulf %839, %891 : vector<1x128xf32>
    %893 = arith.addf %890, %892 : vector<1x128xf32>
    %894 = arith.mulf %881, %817 : vector<1x128xf32>
    %895 = arith.subf %893, %894 : vector<1x128xf32>
    %c4_110 = arith.constant 4 : index
    %c0_111 = arith.constant 0 : index
    %896 = vector.load %arg3[%c4_110, %c0_111] : memref<8x128xf32, #tpu.memory_space<vmem>>, vector<1x128xf32>
    %897 = vector.broadcast %31 : f32 to vector<1x128xf32>
    %898 = arith.mulf %896, %897 : vector<1x128xf32>
    %899 = arith.addf %882, %898 : vector<1x128xf32>
    %cst_112 = arith.constant 5.000000e-02 : f32
    %900 = vector.broadcast %cst_112 : f32 to vector<1x128xf32>
    %901 = arith.mulf %900, %899 : vector<1x128xf32>
    %902 = arith.addf %725, %901 : vector<1x128xf32>
    %c4_113 = arith.constant 4 : index
    %c0_114 = arith.constant 0 : index
    %903 = vector.load %arg3[%c4_113, %c0_114] : memref<8x128xf32, #tpu.memory_space<vmem>>, vector<1x128xf32>
    %904 = vector.broadcast %32 : f32 to vector<1x128xf32>
    %905 = arith.mulf %903, %904 : vector<1x128xf32>
    %906 = arith.addf %885, %905 : vector<1x128xf32>
    %cst_115 = arith.constant 5.000000e-02 : f32
    %907 = vector.broadcast %cst_115 : f32 to vector<1x128xf32>
    %908 = arith.mulf %907, %906 : vector<1x128xf32>
    %909 = arith.addf %732, %908 : vector<1x128xf32>
    %c4_116 = arith.constant 4 : index
    %c0_117 = arith.constant 0 : index
    %910 = vector.load %arg3[%c4_116, %c0_117] : memref<8x128xf32, #tpu.memory_space<vmem>>, vector<1x128xf32>
    %911 = vector.broadcast %33 : f32 to vector<1x128xf32>
    %912 = arith.mulf %910, %911 : vector<1x128xf32>
    %913 = arith.addf %888, %912 : vector<1x128xf32>
    %cst_118 = arith.constant 5.000000e-02 : f32
    %914 = vector.broadcast %cst_118 : f32 to vector<1x128xf32>
    %915 = arith.mulf %914, %913 : vector<1x128xf32>
    %916 = arith.addf %739, %915 : vector<1x128xf32>
    %c4_119 = arith.constant 4 : index
    %c0_120 = arith.constant 0 : index
    %917 = vector.load %arg3[%c4_119, %c0_120] : memref<8x128xf32, #tpu.memory_space<vmem>>, vector<1x128xf32>
    %918 = vector.broadcast %34 : f32 to vector<1x128xf32>
    %919 = arith.mulf %917, %918 : vector<1x128xf32>
    %920 = arith.addf %895, %919 : vector<1x128xf32>
    %cst_121 = arith.constant 5.000000e-02 : f32
    %921 = vector.broadcast %cst_121 : f32 to vector<1x128xf32>
    %922 = arith.mulf %921, %920 : vector<1x128xf32>
    %923 = arith.addf %746, %922 : vector<1x128xf32>
    %c20_122 = arith.constant 20 : index
    %c0_123 = arith.constant 0 : index
    %924 = vector.load %arg4[%c20_122, %c0_123] : memref<32x128xf32, #tpu.memory_space<vmem>>, vector<1x128xf32>
    tpu.vector_store %arg4[%c20_122, %c0_123], %902 {strides = array<i32>} : memref<32x128xf32, #tpu.memory_space<vmem>>, vector<1x128xf32>,
    %c21_124 = arith.constant 21 : index
    %c0_125 = arith.constant 0 : index
    %925 = vector.load %arg4[%c21_124, %c0_125] : memref<32x128xf32, #tpu.memory_space<vmem>>, vector<1x128xf32>
    tpu.vector_store %arg4[%c21_124, %c0_125], %909 {strides = array<i32>} : memref<32x128xf32, #tpu.memory_space<vmem>>, vector<1x128xf32>,
    %c22_126 = arith.constant 22 : index
    %c0_127 = arith.constant 0 : index
    %926 = vector.load %arg4[%c22_126, %c0_127] : memref<32x128xf32, #tpu.memory_space<vmem>>, vector<1x128xf32>
    tpu.vector_store %arg4[%c22_126, %c0_127], %916 {strides = array<i32>} : memref<32x128xf32, #tpu.memory_space<vmem>>, vector<1x128xf32>,
    %c23_128 = arith.constant 23 : index
    %c0_129 = arith.constant 0 : index
    %927 = vector.load %arg4[%c23_128, %c0_129] : memref<32x128xf32, #tpu.memory_space<vmem>>, vector<1x128xf32>
    tpu.vector_store %arg4[%c23_128, %c0_129], %923 {strides = array<i32>} : memref<32x128xf32, #tpu.memory_space<vmem>>, vector<1x128xf32>,
    %928 = vector.broadcast %0 : f32 to vector<1x128xf32>
    %929 = arith.mulf %902, %928 : vector<1x128xf32>
    %930 = vector.broadcast %1 : f32 to vector<1x128xf32>
    %931 = arith.mulf %909, %930 : vector<1x128xf32>
    %932 = arith.addf %929, %931 : vector<1x128xf32>
    %933 = vector.broadcast %2 : f32 to vector<1x128xf32>
    %934 = arith.mulf %916, %933 : vector<1x128xf32>
    %935 = arith.addf %932, %934 : vector<1x128xf32>
    %936 = vector.broadcast %3 : f32 to vector<1x128xf32>
    %937 = arith.mulf %923, %936 : vector<1x128xf32>
    %938 = arith.addf %935, %937 : vector<1x128xf32>
    %939 = vector.broadcast %16 : f32 to vector<1x128xf32>
    %940 = arith.addf %938, %939 : vector<1x128xf32>
    %941 = math.tanh %940 : vector<1x128xf32>
    %942 = vector.broadcast %4 : f32 to vector<1x128xf32>
    %943 = arith.mulf %902, %942 : vector<1x128xf32>
    %944 = vector.broadcast %5 : f32 to vector<1x128xf32>
    %945 = arith.mulf %909, %944 : vector<1x128xf32>
    %946 = arith.addf %943, %945 : vector<1x128xf32>
    %947 = vector.broadcast %6 : f32 to vector<1x128xf32>
    %948 = arith.mulf %916, %947 : vector<1x128xf32>
    %949 = arith.addf %946, %948 : vector<1x128xf32>
    %950 = vector.broadcast %7 : f32 to vector<1x128xf32>
    %951 = arith.mulf %923, %950 : vector<1x128xf32>
    %952 = arith.addf %949, %951 : vector<1x128xf32>
    %953 = vector.broadcast %17 : f32 to vector<1x128xf32>
    %954 = arith.addf %952, %953 : vector<1x128xf32>
    %955 = math.tanh %954 : vector<1x128xf32>
    %956 = vector.broadcast %8 : f32 to vector<1x128xf32>
    %957 = arith.mulf %902, %956 : vector<1x128xf32>
    %958 = vector.broadcast %9 : f32 to vector<1x128xf32>
    %959 = arith.mulf %909, %958 : vector<1x128xf32>
    %960 = arith.addf %957, %959 : vector<1x128xf32>
    %961 = vector.broadcast %10 : f32 to vector<1x128xf32>
    %962 = arith.mulf %916, %961 : vector<1x128xf32>
    %963 = arith.addf %960, %962 : vector<1x128xf32>
    %964 = vector.broadcast %11 : f32 to vector<1x128xf32>
    %965 = arith.mulf %923, %964 : vector<1x128xf32>
    %966 = arith.addf %963, %965 : vector<1x128xf32>
    %967 = vector.broadcast %18 : f32 to vector<1x128xf32>
    %968 = arith.addf %966, %967 : vector<1x128xf32>
    %969 = math.tanh %968 : vector<1x128xf32>
    %970 = vector.broadcast %12 : f32 to vector<1x128xf32>
    %971 = arith.mulf %902, %970 : vector<1x128xf32>
    %972 = vector.broadcast %13 : f32 to vector<1x128xf32>
    %973 = arith.mulf %909, %972 : vector<1x128xf32>
    %974 = arith.addf %971, %973 : vector<1x128xf32>
    %975 = vector.broadcast %14 : f32 to vector<1x128xf32>
    %976 = arith.mulf %916, %975 : vector<1x128xf32>
    %977 = arith.addf %974, %976 : vector<1x128xf32>
    %978 = vector.broadcast %15 : f32 to vector<1x128xf32>
    %979 = arith.mulf %923, %978 : vector<1x128xf32>
    %980 = arith.addf %977, %979 : vector<1x128xf32>
    %981 = vector.broadcast %19 : f32 to vector<1x128xf32>
    %982 = arith.addf %980, %981 : vector<1x128xf32>
    %983 = math.tanh %982 : vector<1x128xf32>
    %984 = vector.broadcast %0 : f32 to vector<1x128xf32>
    %985 = arith.mulf %941, %984 : vector<1x128xf32>
    %986 = vector.broadcast %4 : f32 to vector<1x128xf32>
    %987 = arith.mulf %955, %986 : vector<1x128xf32>
    %988 = arith.addf %985, %987 : vector<1x128xf32>
    %989 = vector.broadcast %8 : f32 to vector<1x128xf32>
    %990 = arith.mulf %969, %989 : vector<1x128xf32>
    %991 = arith.addf %988, %990 : vector<1x128xf32>
    %992 = vector.broadcast %12 : f32 to vector<1x128xf32>
    %993 = arith.mulf %983, %992 : vector<1x128xf32>
    %994 = arith.addf %991, %993 : vector<1x128xf32>
    %995 = vector.broadcast %1 : f32 to vector<1x128xf32>
    %996 = arith.mulf %941, %995 : vector<1x128xf32>
    %997 = vector.broadcast %5 : f32 to vector<1x128xf32>
    %998 = arith.mulf %955, %997 : vector<1x128xf32>
    %999 = arith.addf %996, %998 : vector<1x128xf32>
    %1000 = vector.broadcast %9 : f32 to vector<1x128xf32>
    %1001 = arith.mulf %969, %1000 : vector<1x128xf32>
    %1002 = arith.addf %999, %1001 : vector<1x128xf32>
    %1003 = vector.broadcast %13 : f32 to vector<1x128xf32>
    %1004 = arith.mulf %983, %1003 : vector<1x128xf32>
    %1005 = arith.addf %1002, %1004 : vector<1x128xf32>
    %1006 = vector.broadcast %2 : f32 to vector<1x128xf32>
    %1007 = arith.mulf %941, %1006 : vector<1x128xf32>
    %1008 = vector.broadcast %6 : f32 to vector<1x128xf32>
    %1009 = arith.mulf %955, %1008 : vector<1x128xf32>
    %1010 = arith.addf %1007, %1009 : vector<1x128xf32>
    %1011 = vector.broadcast %10 : f32 to vector<1x128xf32>
    %1012 = arith.mulf %969, %1011 : vector<1x128xf32>
    %1013 = arith.addf %1010, %1012 : vector<1x128xf32>
    %1014 = vector.broadcast %14 : f32 to vector<1x128xf32>
    %1015 = arith.mulf %983, %1014 : vector<1x128xf32>
    %1016 = arith.addf %1013, %1015 : vector<1x128xf32>
    %1017 = vector.broadcast %3 : f32 to vector<1x128xf32>
    %1018 = arith.mulf %941, %1017 : vector<1x128xf32>
    %1019 = vector.broadcast %7 : f32 to vector<1x128xf32>
    %1020 = arith.mulf %955, %1019 : vector<1x128xf32>
    %1021 = arith.addf %1018, %1020 : vector<1x128xf32>
    %1022 = vector.broadcast %11 : f32 to vector<1x128xf32>
    %1023 = arith.mulf %969, %1022 : vector<1x128xf32>
    %1024 = arith.addf %1021, %1023 : vector<1x128xf32>
    %1025 = vector.broadcast %15 : f32 to vector<1x128xf32>
    %1026 = arith.mulf %983, %1025 : vector<1x128xf32>
    %1027 = arith.addf %1024, %1026 : vector<1x128xf32>
    %1028 = vector.broadcast %22 : f32 to vector<1x128xf32>
    %1029 = arith.mulf %902, %1028 : vector<1x128xf32>
    %1030 = vector.broadcast %23 : f32 to vector<1x128xf32>
    %1031 = arith.mulf %909, %1030 : vector<1x128xf32>
    %1032 = arith.addf %1029, %1031 : vector<1x128xf32>
    %1033 = vector.broadcast %24 : f32 to vector<1x128xf32>
    %1034 = arith.mulf %916, %1033 : vector<1x128xf32>
    %1035 = arith.addf %1032, %1034 : vector<1x128xf32>
    %1036 = vector.broadcast %25 : f32 to vector<1x128xf32>
    %1037 = arith.mulf %923, %1036 : vector<1x128xf32>
    %1038 = arith.addf %1035, %1037 : vector<1x128xf32>
    %1039 = vector.broadcast %26 : f32 to vector<1x128xf32>
    %1040 = arith.mulf %994, %1039 : vector<1x128xf32>
    %1041 = arith.addf %1038, %1040 : vector<1x128xf32>
    %1042 = vector.broadcast %27 : f32 to vector<1x128xf32>
    %1043 = arith.mulf %1005, %1042 : vector<1x128xf32>
    %1044 = arith.addf %1041, %1043 : vector<1x128xf32>
    %1045 = vector.broadcast %28 : f32 to vector<1x128xf32>
    %1046 = arith.mulf %1016, %1045 : vector<1x128xf32>
    %1047 = arith.addf %1044, %1046 : vector<1x128xf32>
    %1048 = vector.broadcast %29 : f32 to vector<1x128xf32>
    %1049 = arith.mulf %1027, %1048 : vector<1x128xf32>
    %1050 = arith.addf %1047, %1049 : vector<1x128xf32>
    %1051 = vector.broadcast %30 : f32 to vector<1x128xf32>
    %1052 = arith.addf %1050, %1051 : vector<1x128xf32>
    %1053 = arith.negf %1052 : vector<1x128xf32>
    %1054 = math.exp %1053 : vector<1x128xf32>
    %cst_130 = arith.constant 1.000000e+00 : f32
    %1055 = vector.broadcast %cst_130 : f32 to vector<1x128xf32>
    %1056 = arith.addf %1055, %1054 : vector<1x128xf32>
    %1057 = arith.divf %1055, %1056 : vector<1x128xf32>
    %1058 = arith.mulf %1057, %1027 : vector<1x128xf32>
    %1059 = arith.mulf %1058, %1027 : vector<1x128xf32>
    %cst_131 = arith.constant 0.000000e+00 : f32
    %1060 = arith.subf %cst_131, %20 : f32
    %1061 = vector.broadcast %1060 : f32 to vector<1x128xf32>
    %1062 = arith.mulf %1027, %1061 : vector<1x128xf32>
    %cst_132 = arith.constant 0.000000e+00 : f32
    %1063 = arith.subf %cst_132, %21 : f32
    %1064 = vector.broadcast %1063 : f32 to vector<1x128xf32>
    %1065 = arith.mulf %1027, %1064 : vector<1x128xf32>
    %1066 = vector.broadcast %20 : f32 to vector<1x128xf32>
    %1067 = arith.mulf %1005, %1066 : vector<1x128xf32>
    %1068 = vector.broadcast %21 : f32 to vector<1x128xf32>
    %1069 = arith.mulf %1016, %1068 : vector<1x128xf32>
    %1070 = arith.addf %1067, %1069 : vector<1x128xf32>
    %1071 = arith.mulf %1058, %994 : vector<1x128xf32>
    %1072 = arith.subf %1070, %1071 : vector<1x128xf32>
    %c5_133 = arith.constant 5 : index
    %c0_134 = arith.constant 0 : index
    %1073 = vector.load %arg3[%c5_133, %c0_134] : memref<8x128xf32, #tpu.memory_space<vmem>>, vector<1x128xf32>
    %1074 = vector.broadcast %31 : f32 to vector<1x128xf32>
    %1075 = arith.mulf %1073, %1074 : vector<1x128xf32>
    %1076 = arith.addf %1059, %1075 : vector<1x128xf32>
    %cst_135 = arith.constant 5.000000e-02 : f32
    %1077 = vector.broadcast %cst_135 : f32 to vector<1x128xf32>
    %1078 = arith.mulf %1077, %1076 : vector<1x128xf32>
    %1079 = arith.addf %902, %1078 : vector<1x128xf32>
    %c5_136 = arith.constant 5 : index
    %c0_137 = arith.constant 0 : index
    %1080 = vector.load %arg3[%c5_136, %c0_137] : memref<8x128xf32, #tpu.memory_space<vmem>>, vector<1x128xf32>
    %1081 = vector.broadcast %32 : f32 to vector<1x128xf32>
    %1082 = arith.mulf %1080, %1081 : vector<1x128xf32>
    %1083 = arith.addf %1062, %1082 : vector<1x128xf32>
    %cst_138 = arith.constant 5.000000e-02 : f32
    %1084 = vector.broadcast %cst_138 : f32 to vector<1x128xf32>
    %1085 = arith.mulf %1084, %1083 : vector<1x128xf32>
    %1086 = arith.addf %909, %1085 : vector<1x128xf32>
    %c5_139 = arith.constant 5 : index
    %c0_140 = arith.constant 0 : index
    %1087 = vector.load %arg3[%c5_139, %c0_140] : memref<8x128xf32, #tpu.memory_space<vmem>>, vector<1x128xf32>
    %1088 = vector.broadcast %33 : f32 to vector<1x128xf32>
    %1089 = arith.mulf %1087, %1088 : vector<1x128xf32>
    %1090 = arith.addf %1065, %1089 : vector<1x128xf32>
    %cst_141 = arith.constant 5.000000e-02 : f32
    %1091 = vector.broadcast %cst_141 : f32 to vector<1x128xf32>
    %1092 = arith.mulf %1091, %1090 : vector<1x128xf32>
    %1093 = arith.addf %916, %1092 : vector<1x128xf32>
    %c5_142 = arith.constant 5 : index
    %c0_143 = arith.constant 0 : index
    %1094 = vector.load %arg3[%c5_142, %c0_143] : memref<8x128xf32, #tpu.memory_space<vmem>>, vector<1x128xf32>
    %1095 = vector.broadcast %34 : f32 to vector<1x128xf32>
    %1096 = arith.mulf %1094, %1095 : vector<1x128xf32>
    %1097 = arith.addf %1072, %1096 : vector<1x128xf32>
    %cst_144 = arith.constant 5.000000e-02 : f32
    %1098 = vector.broadcast %cst_144 : f32 to vector<1x128xf32>
    %1099 = arith.mulf %1098, %1097 : vector<1x128xf32>
    %1100 = arith.addf %923, %1099 : vector<1x128xf32>
    %c24_145 = arith.constant 24 : index
    %c0_146 = arith.constant 0 : index
    %1101 = vector.load %arg4[%c24_145, %c0_146] : memref<32x128xf32, #tpu.memory_space<vmem>>, vector<1x128xf32>
    tpu.vector_store %arg4[%c24_145, %c0_146], %1079 {strides = array<i32>} : memref<32x128xf32, #tpu.memory_space<vmem>>, vector<1x128xf32>,
    %c25_147 = arith.constant 25 : index
    %c0_148 = arith.constant 0 : index
    %1102 = vector.load %arg4[%c25_147, %c0_148] : memref<32x128xf32, #tpu.memory_space<vmem>>, vector<1x128xf32>
    tpu.vector_store %arg4[%c25_147, %c0_148], %1086 {strides = array<i32>} : memref<32x128xf32, #tpu.memory_space<vmem>>, vector<1x128xf32>,
    %c26_149 = arith.constant 26 : index
    %c0_150 = arith.constant 0 : index
    %1103 = vector.load %arg4[%c26_149, %c0_150] : memref<32x128xf32, #tpu.memory_space<vmem>>, vector<1x128xf32>
    tpu.vector_store %arg4[%c26_149, %c0_150], %1093 {strides = array<i32>} : memref<32x128xf32, #tpu.memory_space<vmem>>, vector<1x128xf32>,
    %c27_151 = arith.constant 27 : index
    %c0_152 = arith.constant 0 : index
    %1104 = vector.load %arg4[%c27_151, %c0_152] : memref<32x128xf32, #tpu.memory_space<vmem>>, vector<1x128xf32>
    tpu.vector_store %arg4[%c27_151, %c0_152], %1100 {strides = array<i32>} : memref<32x128xf32, #tpu.memory_space<vmem>>, vector<1x128xf32>,
    %1105 = vector.broadcast %0 : f32 to vector<1x128xf32>
    %1106 = arith.mulf %1079, %1105 : vector<1x128xf32>
    %1107 = vector.broadcast %1 : f32 to vector<1x128xf32>
    %1108 = arith.mulf %1086, %1107 : vector<1x128xf32>
    %1109 = arith.addf %1106, %1108 : vector<1x128xf32>
    %1110 = vector.broadcast %2 : f32 to vector<1x128xf32>
    %1111 = arith.mulf %1093, %1110 : vector<1x128xf32>
    %1112 = arith.addf %1109, %1111 : vector<1x128xf32>
    %1113 = vector.broadcast %3 : f32 to vector<1x128xf32>
    %1114 = arith.mulf %1100, %1113 : vector<1x128xf32>
    %1115 = arith.addf %1112, %1114 : vector<1x128xf32>
    %1116 = vector.broadcast %16 : f32 to vector<1x128xf32>
    %1117 = arith.addf %1115, %1116 : vector<1x128xf32>
    %1118 = math.tanh %1117 : vector<1x128xf32>
    %1119 = vector.broadcast %4 : f32 to vector<1x128xf32>
    %1120 = arith.mulf %1079, %1119 : vector<1x128xf32>
    %1121 = vector.broadcast %5 : f32 to vector<1x128xf32>
    %1122 = arith.mulf %1086, %1121 : vector<1x128xf32>
    %1123 = arith.addf %1120, %1122 : vector<1x128xf32>
    %1124 = vector.broadcast %6 : f32 to vector<1x128xf32>
    %1125 = arith.mulf %1093, %1124 : vector<1x128xf32>
    %1126 = arith.addf %1123, %1125 : vector<1x128xf32>
    %1127 = vector.broadcast %7 : f32 to vector<1x128xf32>
    %1128 = arith.mulf %1100, %1127 : vector<1x128xf32>
    %1129 = arith.addf %1126, %1128 : vector<1x128xf32>
    %1130 = vector.broadcast %17 : f32 to vector<1x128xf32>
    %1131 = arith.addf %1129, %1130 : vector<1x128xf32>
    %1132 = math.tanh %1131 : vector<1x128xf32>
    %1133 = vector.broadcast %8 : f32 to vector<1x128xf32>
    %1134 = arith.mulf %1079, %1133 : vector<1x128xf32>
    %1135 = vector.broadcast %9 : f32 to vector<1x128xf32>
    %1136 = arith.mulf %1086, %1135 : vector<1x128xf32>
    %1137 = arith.addf %1134, %1136 : vector<1x128xf32>
    %1138 = vector.broadcast %10 : f32 to vector<1x128xf32>
    %1139 = arith.mulf %1093, %1138 : vector<1x128xf32>
    %1140 = arith.addf %1137, %1139 : vector<1x128xf32>
    %1141 = vector.broadcast %11 : f32 to vector<1x128xf32>
    %1142 = arith.mulf %1100, %1141 : vector<1x128xf32>
    %1143 = arith.addf %1140, %1142 : vector<1x128xf32>
    %1144 = vector.broadcast %18 : f32 to vector<1x128xf32>
    %1145 = arith.addf %1143, %1144 : vector<1x128xf32>
    %1146 = math.tanh %1145 : vector<1x128xf32>
    %1147 = vector.broadcast %12 : f32 to vector<1x128xf32>
    %1148 = arith.mulf %1079, %1147 : vector<1x128xf32>
    %1149 = vector.broadcast %13 : f32 to vector<1x128xf32>
    %1150 = arith.mulf %1086, %1149 : vector<1x128xf32>
    %1151 = arith.addf %1148, %1150 : vector<1x128xf32>
    %1152 = vector.broadcast %14 : f32 to vector<1x128xf32>
    %1153 = arith.mulf %1093, %1152 : vector<1x128xf32>
    %1154 = arith.addf %1151, %1153 : vector<1x128xf32>
    %1155 = vector.broadcast %15 : f32 to vector<1x128xf32>
    %1156 = arith.mulf %1100, %1155 : vector<1x128xf32>
    %1157 = arith.addf %1154, %1156 : vector<1x128xf32>
    %1158 = vector.broadcast %19 : f32 to vector<1x128xf32>
    %1159 = arith.addf %1157, %1158 : vector<1x128xf32>
    %1160 = math.tanh %1159 : vector<1x128xf32>
    %1161 = vector.broadcast %0 : f32 to vector<1x128xf32>
    %1162 = arith.mulf %1118, %1161 : vector<1x128xf32>
    %1163 = vector.broadcast %4 : f32 to vector<1x128xf32>
    %1164 = arith.mulf %1132, %1163 : vector<1x128xf32>
    %1165 = arith.addf %1162, %1164 : vector<1x128xf32>
    %1166 = vector.broadcast %8 : f32 to vector<1x128xf32>
    %1167 = arith.mulf %1146, %1166 : vector<1x128xf32>
    %1168 = arith.addf %1165, %1167 : vector<1x128xf32>
    %1169 = vector.broadcast %12 : f32 to vector<1x128xf32>
    %1170 = arith.mulf %1160, %1169 : vector<1x128xf32>
    %1171 = arith.addf %1168, %1170 : vector<1x128xf32>
    %1172 = vector.broadcast %1 : f32 to vector<1x128xf32>
    %1173 = arith.mulf %1118, %1172 : vector<1x128xf32>
    %1174 = vector.broadcast %5 : f32 to vector<1x128xf32>
    %1175 = arith.mulf %1132, %1174 : vector<1x128xf32>
    %1176 = arith.addf %1173, %1175 : vector<1x128xf32>
    %1177 = vector.broadcast %9 : f32 to vector<1x128xf32>
    %1178 = arith.mulf %1146, %1177 : vector<1x128xf32>
    %1179 = arith.addf %1176, %1178 : vector<1x128xf32>
    %1180 = vector.broadcast %13 : f32 to vector<1x128xf32>
    %1181 = arith.mulf %1160, %1180 : vector<1x128xf32>
    %1182 = arith.addf %1179, %1181 : vector<1x128xf32>
    %1183 = vector.broadcast %2 : f32 to vector<1x128xf32>
    %1184 = arith.mulf %1118, %1183 : vector<1x128xf32>
    %1185 = vector.broadcast %6 : f32 to vector<1x128xf32>
    %1186 = arith.mulf %1132, %1185 : vector<1x128xf32>
    %1187 = arith.addf %1184, %1186 : vector<1x128xf32>
    %1188 = vector.broadcast %10 : f32 to vector<1x128xf32>
    %1189 = arith.mulf %1146, %1188 : vector<1x128xf32>
    %1190 = arith.addf %1187, %1189 : vector<1x128xf32>
    %1191 = vector.broadcast %14 : f32 to vector<1x128xf32>
    %1192 = arith.mulf %1160, %1191 : vector<1x128xf32>
    %1193 = arith.addf %1190, %1192 : vector<1x128xf32>
    %1194 = vector.broadcast %3 : f32 to vector<1x128xf32>
    %1195 = arith.mulf %1118, %1194 : vector<1x128xf32>
    %1196 = vector.broadcast %7 : f32 to vector<1x128xf32>
    %1197 = arith.mulf %1132, %1196 : vector<1x128xf32>
    %1198 = arith.addf %1195, %1197 : vector<1x128xf32>
    %1199 = vector.broadcast %11 : f32 to vector<1x128xf32>
    %1200 = arith.mulf %1146, %1199 : vector<1x128xf32>
    %1201 = arith.addf %1198, %1200 : vector<1x128xf32>
    %1202 = vector.broadcast %15 : f32 to vector<1x128xf32>
    %1203 = arith.mulf %1160, %1202 : vector<1x128xf32>
    %1204 = arith.addf %1201, %1203 : vector<1x128xf32>
    %1205 = vector.broadcast %22 : f32 to vector<1x128xf32>
    %1206 = arith.mulf %1079, %1205 : vector<1x128xf32>
    %1207 = vector.broadcast %23 : f32 to vector<1x128xf32>
    %1208 = arith.mulf %1086, %1207 : vector<1x128xf32>
    %1209 = arith.addf %1206, %1208 : vector<1x128xf32>
    %1210 = vector.broadcast %24 : f32 to vector<1x128xf32>
    %1211 = arith.mulf %1093, %1210 : vector<1x128xf32>
    %1212 = arith.addf %1209, %1211 : vector<1x128xf32>
    %1213 = vector.broadcast %25 : f32 to vector<1x128xf32>
    %1214 = arith.mulf %1100, %1213 : vector<1x128xf32>
    %1215 = arith.addf %1212, %1214 : vector<1x128xf32>
    %1216 = vector.broadcast %26 : f32 to vector<1x128xf32>
    %1217 = arith.mulf %1171, %1216 : vector<1x128xf32>
    %1218 = arith.addf %1215, %1217 : vector<1x128xf32>
    %1219 = vector.broadcast %27 : f32 to vector<1x128xf32>
    %1220 = arith.mulf %1182, %1219 : vector<1x128xf32>
    %1221 = arith.addf %1218, %1220 : vector<1x128xf32>
    %1222 = vector.broadcast %28 : f32 to vector<1x128xf32>
    %1223 = arith.mulf %1193, %1222 : vector<1x128xf32>
    %1224 = arith.addf %1221, %1223 : vector<1x128xf32>
    %1225 = vector.broadcast %29 : f32 to vector<1x128xf32>
    %1226 = arith.mulf %1204, %1225 : vector<1x128xf32>
    %1227 = arith.addf %1224, %1226 : vector<1x128xf32>
    %1228 = vector.broadcast %30 : f32 to vector<1x128xf32>
    %1229 = arith.addf %1227, %1228 : vector<1x128xf32>
    %1230 = arith.negf %1229 : vector<1x128xf32>
    %1231 = math.exp %1230 : vector<1x128xf32>
    %cst_153 = arith.constant 1.000000e+00 : f32
    %1232 = vector.broadcast %cst_153 : f32 to vector<1x128xf32>
    %1233 = arith.addf %1232, %1231 : vector<1x128xf32>
    %1234 = arith.divf %1232, %1233 : vector<1x128xf32>
    %1235 = arith.mulf %1234, %1204 : vector<1x128xf32>
    %1236 = arith.mulf %1235, %1204 : vector<1x128xf32>
    %cst_154 = arith.constant 0.000000e+00 : f32
    %1237 = arith.subf %cst_154, %20 : f32
    %1238 = vector.broadcast %1237 : f32 to vector<1x128xf32>
    %1239 = arith.mulf %1204, %1238 : vector<1x128xf32>
    %cst_155 = arith.constant 0.000000e+00 : f32
    %1240 = arith.subf %cst_155, %21 : f32
    %1241 = vector.broadcast %1240 : f32 to vector<1x128xf32>
    %1242 = arith.mulf %1204, %1241 : vector<1x128xf32>
    %1243 = vector.broadcast %20 : f32 to vector<1x128xf32>
    %1244 = arith.mulf %1182, %1243 : vector<1x128xf32>
    %1245 = vector.broadcast %21 : f32 to vector<1x128xf32>
    %1246 = arith.mulf %1193, %1245 : vector<1x128xf32>
    %1247 = arith.addf %1244, %1246 : vector<1x128xf32>
    %1248 = arith.mulf %1235, %1171 : vector<1x128xf32>
    %1249 = arith.subf %1247, %1248 : vector<1x128xf32>
    %c6_156 = arith.constant 6 : index
    %c0_157 = arith.constant 0 : index
    %1250 = vector.load %arg3[%c6_156, %c0_157] : memref<8x128xf32, #tpu.memory_space<vmem>>, vector<1x128xf32>
    %1251 = vector.broadcast %31 : f32 to vector<1x128xf32>
    %1252 = arith.mulf %1250, %1251 : vector<1x128xf32>
    %1253 = arith.addf %1236, %1252 : vector<1x128xf32>
    %cst_158 = arith.constant 5.000000e-02 : f32
    %1254 = vector.broadcast %cst_158 : f32 to vector<1x128xf32>
    %1255 = arith.mulf %1254, %1253 : vector<1x128xf32>
    %1256 = arith.addf %1079, %1255 : vector<1x128xf32>
    %c6_159 = arith.constant 6 : index
    %c0_160 = arith.constant 0 : index
    %1257 = vector.load %arg3[%c6_159, %c0_160] : memref<8x128xf32, #tpu.memory_space<vmem>>, vector<1x128xf32>
    %1258 = vector.broadcast %32 : f32 to vector<1x128xf32>
    %1259 = arith.mulf %1257, %1258 : vector<1x128xf32>
    %1260 = arith.addf %1239, %1259 : vector<1x128xf32>
    %cst_161 = arith.constant 5.000000e-02 : f32
    %1261 = vector.broadcast %cst_161 : f32 to vector<1x128xf32>
    %1262 = arith.mulf %1261, %1260 : vector<1x128xf32>
    %1263 = arith.addf %1086, %1262 : vector<1x128xf32>
    %c6_162 = arith.constant 6 : index
    %c0_163 = arith.constant 0 : index
    %1264 = vector.load %arg3[%c6_162, %c0_163] : memref<8x128xf32, #tpu.memory_space<vmem>>, vector<1x128xf32>
    %1265 = vector.broadcast %33 : f32 to vector<1x128xf32>
    %1266 = arith.mulf %1264, %1265 : vector<1x128xf32>
    %1267 = arith.addf %1242, %1266 : vector<1x128xf32>
    %cst_164 = arith.constant 5.000000e-02 : f32
    %1268 = vector.broadcast %cst_164 : f32 to vector<1x128xf32>
    %1269 = arith.mulf %1268, %1267 : vector<1x128xf32>
    %1270 = arith.addf %1093, %1269 : vector<1x128xf32>
    %c6_165 = arith.constant 6 : index
    %c0_166 = arith.constant 0 : index
    %1271 = vector.load %arg3[%c6_165, %c0_166] : memref<8x128xf32, #tpu.memory_space<vmem>>, vector<1x128xf32>
    %1272 = vector.broadcast %34 : f32 to vector<1x128xf32>
    %1273 = arith.mulf %1271, %1272 : vector<1x128xf32>
    %1274 = arith.addf %1249, %1273 : vector<1x128xf32>
    %cst_167 = arith.constant 5.000000e-02 : f32
    %1275 = vector.broadcast %cst_167 : f32 to vector<1x128xf32>
    %1276 = arith.mulf %1275, %1274 : vector<1x128xf32>
    %1277 = arith.addf %1100, %1276 : vector<1x128xf32>
    %c28_168 = arith.constant 28 : index
    %c0_169 = arith.constant 0 : index
    %1278 = vector.load %arg4[%c28_168, %c0_169] : memref<32x128xf32, #tpu.memory_space<vmem>>, vector<1x128xf32>
    tpu.vector_store %arg4[%c28_168, %c0_169], %1256 {strides = array<i32>} : memref<32x128xf32, #tpu.memory_space<vmem>>, vector<1x128xf32>,
    %c29_170 = arith.constant 29 : index
    %c0_171 = arith.constant 0 : index
    %1279 = vector.load %arg4[%c29_170, %c0_171] : memref<32x128xf32, #tpu.memory_space<vmem>>, vector<1x128xf32>
    tpu.vector_store %arg4[%c29_170, %c0_171], %1263 {strides = array<i32>} : memref<32x128xf32, #tpu.memory_space<vmem>>, vector<1x128xf32>,
    %c30_172 = arith.constant 30 : index
    %c0_173 = arith.constant 0 : index
    %1280 = vector.load %arg4[%c30_172, %c0_173] : memref<32x128xf32, #tpu.memory_space<vmem>>, vector<1x128xf32>
    tpu.vector_store %arg4[%c30_172, %c0_173], %1270 {strides = array<i32>} : memref<32x128xf32, #tpu.memory_space<vmem>>, vector<1x128xf32>,
    %c31_174 = arith.constant 31 : index
    %c0_175 = arith.constant 0 : index
    %1281 = vector.load %arg4[%c31_174, %c0_175] : memref<32x128xf32, #tpu.memory_space<vmem>>, vector<1x128xf32>
    tpu.vector_store %arg4[%c31_174, %c0_175], %1277 {strides = array<i32>} : memref<32x128xf32, #tpu.memory_space<vmem>>, vector<1x128xf32>,
    return
  }
  func.func @transform_0(%arg0: i32) -> i32 {
    %c0_i32 = arith.constant 0 : i32
    %c0_i32_0 = arith.constant 0 : i32
    return %c0_i32 : i32
  }
  func.func @transform_1(%arg0: i32) -> (i32, i32) {
    %c0_i32 = arith.constant 0 : i32
    %c0_i32_0 = arith.constant 0 : i32
    return %c0_i32, %arg0 : i32, i32
  }
  func.func @transform_2(%arg0: i32) -> (i32, i32) {
    %c0_i32 = arith.constant 0 : i32
    %c0_i32_0 = arith.constant 0 : i32
    return %c0_i32, %arg0 : i32, i32
  }
  func.func @transform_3(%arg0: i32) -> (i32, i32) {
    %c0_i32 = arith.constant 0 : i32
    %c0_i32_0 = arith.constant 0 : i32
    return %c0_i32, %arg0 : i32, i32
  }
}

</mosaic_0001>

<llo_original>
// kernel: tpu_custom_call.1
$region0: #{tpu_custom_call.1}
  #allocation0 [shape = 'u32[]', space=smem, size = 0x4, offset = 0x4, fixed_abs, tag = 'smem constant byte address 0x4 - core index']
  #allocation1 [shape = 'u32[144,128]{1,0:T(1,128)}', space=vmem, size = 0x12000, scoped, tag = 'internal scratch']
  %s0 = inlined_call_operand.hbm [shape: f32[35], index: 0, kind: input, shape index: {}]
  %s1 = inlined_call_operand.hbm [shape: f32[4,128], index: 1, kind: input, shape index: {}]
  %s2 = inlined_call_operand.hbm [shape: f32[8,128], index: 2, kind: input, shape index: {}]
  %s3 = inlined_call_operand.hbm [shape: f32[32,128], index: 3, kind: output, shape index: {}]
  %s4 = sld [smem:[#allocation0]]
  $region34: #{tpu_custom_call.1} parent=0
    _
  %s6 = ssub.s32 1, %s4
  %s7 = scalar_select 0, %s6, %s4
  $region1: #{tpu_custom_call.1} parent=0
    #allocation2 [shape = 'u8[512]{0}', space=smem, size = 0x200, scoped, tag = 'input window, operand 0, single buffered']
    #allocation3 [shape = 's32[1]{0}', space=sflag, size = 0x4, scoped, tag = 'scoped memory for tpu_custom_call.1']
    #allocation4 [shape = 's32[1]{0}', space=sflag, size = 0x4, scoped, tag = 'scoped memory for tpu_custom_call.1']
    #allocation5 [shape = 's32[1]{0}', space=sflag, size = 0x4, scoped, tag = 'scoped memory for tpu_custom_call.1']
    #allocation6 [shape = 'u8[2048]{0}', space=vmem, size = 0x800, scoped, tag = 'input window, operand 1, single buffered']
    #allocation7 [shape = 'u8[4096]{0}', space=vmem, size = 0x1000, scoped, tag = 'input window, operand 2, single buffered']
    #allocation8 [shape = 's32[1]{0}', space=sflag, size = 0x4, scoped, tag = 'scoped memory for tpu_custom_call.1']
    #allocation9 [shape = 'u8[16384]{0}', space=vmem, size = 0x4000, scoped, tag = 'output window, operand 0, single buffered']
    %8 = vsyncpa [#allocation5], 0
    %9 = vsyncpa [#allocation3], 0
    %10 = vsyncpa [#allocation8], 0
    %11 = vsyncpa [#allocation4], 0
    // Predicated region
    $region2: #{tpu_custom_call.1} parent=1 // pred_check
      _
    $region3: #{tpu_custom_call.1} parent=1 // pred_check_branch
      %13 = sbr.rel (0) target = $region5
    $region4: #{tpu_custom_call.1} parent=1 // pred_region
      %s15 = ssub.s32 16, 16
      %16 = vsyncadd [#allocation5], %s15
      %19 = dma.hbm_to_smem %s0, 16, [#allocation2], [#allocation5]
    $region5: #{tpu_custom_call.1} parent=1 // pred_fallthru
      _
    // Predicated region
    $region6: #{tpu_custom_call.1} parent=1 // pred_check
      _
    $region7: #{tpu_custom_call.1} parent=1 // pred_check_branch
      %21 = sbr.rel (0) target = $region9
    $region8: #{tpu_custom_call.1} parent=1 // pred_region
      %s23 = ssub.s32 64, 64
      %24 = vsyncadd [#allocation3], %s23
      %s26 = sshll.u32 [#allocation6], 4
      %s27 = int_to_ptr.vmem [resolvable:$true] %s26
      %29 = dma.hbm_to_vmem [thread:$0]  %s1, 64, %s27, [#allocation3]
    $region9: #{tpu_custom_call.1} parent=1 // pred_fallthru
      _
    // Predicated region
    $region10: #{tpu_custom_call.1} parent=1 // pred_check
      _
    $region11: #{tpu_custom_call.1} parent=1 // pred_check_branch
      %31 = sbr.rel (0) target = $region13
    $region12: #{tpu_custom_call.1} parent=1 // pred_region
      %s33 = ssub.s32 128, 128
      %34 = vsyncadd [#allocation8], %s33
      %s36 = sshll.u32 [#allocation7], 4
      %s37 = int_to_ptr.vmem [resolvable:$true] %s36
      %39 = dma.hbm_to_vmem [thread:$0]  %s2, 128, %s37, [#allocation8]
    $region13: #{tpu_custom_call.1} parent=1 // pred_fallthru
      _
    // Predicated region
    $region14: #{tpu_custom_call.1} parent=1 // pred_check
      _
    $region15: #{tpu_custom_call.1} parent=1 // pred_check_branch
      %41 = sbr.rel (0) target = $region17
    $region16: #{tpu_custom_call.1} parent=1 // pred_region
      %42 = dma.done [#allocation5], 16
    $region17: #{tpu_custom_call.1} parent=1 // pred_fallthru
      _
    // Predicated region
    $region18: #{tpu_custom_call.1} parent=1 // pred_check
      _
    $region19: #{tpu_custom_call.1} parent=1 // pred_check_branch
      %44 = sbr.rel (0) target = $region21
    $region20: #{tpu_custom_call.1} parent=1 // pred_region
      %45 = dma.done [#allocation3], 64
    $region21: #{tpu_custom_call.1} parent=1 // pred_fallthru
      _
    // Predicated region
    $region22: #{tpu_custom_call.1} parent=1 // pred_check
      _
    $region23: #{tpu_custom_call.1} parent=1 // pred_check_branch
      %47 = sbr.rel (0) target = $region25
    $region24: #{tpu_custom_call.1} parent=1 // pred_region
      %48 = dma.done [#allocation8], 128
    $region25: #{tpu_custom_call.1} parent=1 // pred_fallthru
      _
    %49 = sfence
    %s50 = sld [smem:[#allocation2]]
    %s51 = sld [smem:[#allocation2 + $0x1]]
    %s52 = sld [smem:[#allocation2 + $0x2]]
    %s53 = sld [smem:[#allocation2 + $0x3]]
    %s54 = sld [smem:[#allocation2 + $0x4]]
    %s55 = sld [smem:[#allocation2 + $0x5]]
    %s56 = sld [smem:[#allocation2 + $0x6]]
    %s57 = sld [smem:[#allocation2 + $0x7]]
    %s58 = sld [smem:[#allocation2 + $0x8]]
    %s59 = sld [smem:[#allocation2 + $0x9]]
    %s60 = sld [smem:[#allocation2 + $0xa]]
    %s61 = sld [smem:[#allocation2 + $0xb]]
    %s62 = sld [smem:[#allocation2 + $0xc]]
    %s63 = sld [smem:[#allocation2 + $0xd]]
    %s64 = sld [smem:[#allocation2 + $0xe]]
    %s65 = sld [smem:[#allocation2 + $0xf]]
    %s66 = sld [smem:[#allocation2 + $0x10]]
    %s67 = sld [smem:[#allocation2 + $0x11]]
    %s68 = sld [smem:[#allocation2 + $0x12]]
    %s69 = sld [smem:[#allocation2 + $0x13]]
    %s70 = sld [smem:[#allocation2 + $0x14]]
    %s71 = sld [smem:[#allocation2 + $0x15]]
    %s72 = sld [smem:[#allocation2 + $0x16]]
    %s73 = sld [smem:[#allocation2 + $0x17]]
    %s74 = sld [smem:[#allocation2 + $0x18]]
    %s75 = sld [smem:[#allocation2 + $0x19]]
    %s76 = sld [smem:[#allocation2 + $0x1a]]
    %s77 = sld [smem:[#allocation2 + $0x1b]]
    %s78 = sld [smem:[#allocation2 + $0x1c]]
    %s79 = sld [smem:[#allocation2 + $0x1d]]
    %s80 = sld [smem:[#allocation2 + $0x1e]]
    %s81 = sld [smem:[#allocation2 + $0x1f]]
    %s82 = sld [smem:[#allocation2 + $0x20]]
    %s83 = sld [smem:[#allocation2 + $0x21]]
    %s84 = sld [smem:[#allocation2 + $0x22]]
    %v85 = vld [vmem:[#allocation6] sm:$0x1]
    %v86 = vld [vmem:[#allocation6 + $0x1] sm:$0x1]
    %v87 = vld [vmem:[#allocation6 + $0x2] sm:$0x1]
    %v88 = vld [vmem:[#allocation6 + $0x3] sm:$0x1]
    %89 = vst [vmem:[#allocation9] sm:$0x1] %v85
    %90 = vst [vmem:[#allocation9 + $0x1] sm:$0x1] %v86
    %91 = vst [vmem:[#allocation9 + $0x2] sm:$0x1] %v87
    %92 = vst [vmem:[#allocation9 + $0x3] sm:$0x1] %v88
    %v93 = vstv %s50
    %v94 = vmul.f32 %v85, %v93
    %v95 = vstv %s51
    %v96 = vmul.f32 %v86, %v95
    %v97 = vadd.f32 %v94, %v96
    %v98 = vstv %s52
    %v99 = vmul.f32 %v87, %v98
    %v100 = vadd.f32 %v97, %v99
    %v101 = vstv %s53
    %v102 = vmul.f32 %v88, %v101
    %v103 = vadd.f32 %v100, %v102
    %v104 = vstv %s66
    %v105 = vadd.f32 %v103, %v104
    %v106 = vtanh.pop %v105
    %v107 = vstv %s54
    %v108 = vmul.f32 %v85, %v107
    %v109 = vstv %s55
    %v110 = vmul.f32 %v86, %v109
    %v111 = vadd.f32 %v108, %v110
    %v112 = vstv %s56
    %v113 = vmul.f32 %v87, %v112
    %v114 = vadd.f32 %v111, %v113
    %v115 = vstv %s57
    %v116 = vmul.f32 %v88, %v115
    %v117 = vadd.f32 %v114, %v116
    %v118 = vstv %s67
    %v119 = vadd.f32 %v117, %v118
    %v120 = vtanh.pop %v119
    %v121 = vstv %s58
    %v122 = vmul.f32 %v85, %v121
    %v123 = vstv %s59
    %v124 = vmul.f32 %v86, %v123
    %v125 = vadd.f32 %v122, %v124
    %v126 = vstv %s60
    %v127 = vmul.f32 %v87, %v126
    %v128 = vadd.f32 %v125, %v127
    %v129 = vstv %s61
    %v130 = vmul.f32 %v88, %v129
    %v131 = vadd.f32 %v128, %v130
    %v132 = vstv %s68
    %v133 = vadd.f32 %v131, %v132
    %v134 = vtanh.pop %v133
    %v135 = vstv %s62
    %v136 = vmul.f32 %v85, %v135
    %v137 = vstv %s63
    %v138 = vmul.f32 %v86, %v137
    %v139 = vadd.f32 %v136, %v138
    %v140 = vstv %s64
    %v141 = vmul.f32 %v87, %v140
    %v142 = vadd.f32 %v139, %v141
    %v143 = vstv %s65
    %v144 = vmul.f32 %v88, %v143
    %v145 = vadd.f32 %v142, %v144
    %v146 = vstv %s69
    %v147 = vadd.f32 %v145, %v146
    %v148 = vtanh.pop %v147
    %v149 = vmul.f32 %v106, %v93
    %v150 = vmul.f32 %v120, %v107
    %v151 = vadd.f32 %v149, %v150
    %v152 = vmul.f32 %v134, %v121
    %v153 = vadd.f32 %v151, %v152
    %v154 = vmul.f32 %v148, %v135
    %v155 = vadd.f32 %v153, %v154
    %v156 = vmul.f32 %v106, %v95
    %v157 = vmul.f32 %v120, %v109
    %v158 = vadd.f32 %v156, %v157
    %v159 = vmul.f32 %v134, %v123
    %v160 = vadd.f32 %v158, %v159
    %v161 = vmul.f32 %v148, %v137
    %v162 = vadd.f32 %v160, %v161
    %v163 = vmul.f32 %v106, %v98
    %v164 = vmul.f32 %v120, %v112
    %v165 = vadd.f32 %v163, %v164
    %v166 = vmul.f32 %v134, %v126
    %v167 = vadd.f32 %v165, %v166
    %v168 = vmul.f32 %v148, %v140
    %v169 = vadd.f32 %v167, %v168
    %v170 = vmul.f32 %v106, %v101
    %v171 = vmul.f32 %v120, %v115
    %v172 = vadd.f32 %v170, %v171
    %v173 = vmul.f32 %v134, %v129
    %v174 = vadd.f32 %v172, %v173
    %v175 = vmul.f32 %v148, %v143
    %v176 = vadd.f32 %v174, %v175
    %v177 = vstv %s72
    %v178 = vmul.f32 %v85, %v177
    %v179 = vstv %s73
    %v180 = vmul.f32 %v86, %v179
    %v181 = vadd.f32 %v178, %v180
    %v182 = vstv %s74
    %v183 = vmul.f32 %v87, %v182
    %v184 = vadd.f32 %v181, %v183
    %v185 = vstv %s75
    %v186 = vmul.f32 %v88, %v185
    %v187 = vadd.f32 %v184, %v186
    %v188 = vstv %s76
    %v189 = vmul.f32 %v155, %v188
    %v190 = vadd.f32 %v187, %v189
    %v191 = vstv %s77
    %v192 = vmul.f32 %v162, %v191
    %v193 = vadd.f32 %v190, %v192
    %v194 = vstv %s78
    %v195 = vmul.f32 %v169, %v194
    %v196 = vadd.f32 %v193, %v195
    %v197 = vstv %s79
    %v198 = vmul.f32 %v176, %v197
    %v199 = vadd.f32 %v196, %v198
    %v200 = vstv %s80
    %v201 = vadd.f32 %v199, %v200
    %v202 = vxor.u32 %v201, 2147483648
    %v203 = vmul.f32 %v202, 1.442695
    %v204 = vpow.pop %v203
    %v205 = vadd.f32 %v204, 1.0
    %v206 = vrcp.pop %v205
    %v207 = vmul.f32 1.0, %v206
    %v208 = vmul.f32 %v207, %v176
    %v209 = vmul.f32 %v208, %v176
    %s210 = ssub.f32 0.0, %s70
    %v211 = vstv %s210
    %v212 = vmul.f32 %v176, %v211
    %s213 = ssub.f32 0.0, %s71
    %v214 = vstv %s213
    %v215 = vmul.f32 %v176, %v214
    %v216 = vstv %s70
    %v217 = vmul.f32 %v162, %v216
    %v218 = vstv %s71
    %v219 = vmul.f32 %v169, %v218
    %v220 = vadd.f32 %v217, %v219
    %v221 = vmul.f32 %v208, %v155
    %v222 = vsub.f32 %v220, %v221
    %v223 = vld [vmem:[#allocation7] sm:$0x1]
    %v224 = vstv %s81
    %v225 = vmul.f32 %v223, %v224
    %v226 = vadd.f32 %v209, %v225
    %v227 = vmul.f32 %v226, 0.05
    %v228 = vadd.f32 %v85, %v227
    %v229 = vstv %s82
    %v230 = vmul.f32 %v223, %v229
    %v231 = vadd.f32 %v212, %v230
    %v232 = vmul.f32 %v231, 0.05
    %v233 = vadd.f32 %v86, %v232
    %v234 = vstv %s83
    %v235 = vmul.f32 %v223, %v234
    %v236 = vadd.f32 %v215, %v235
    %v237 = vmul.f32 %v236, 0.05
    %v238 = vadd.f32 %v87, %v237
    %v239 = vstv %s84
    %v240 = vmul.f32 %v223, %v239
    %v241 = vadd.f32 %v222, %v240
    %v242 = vmul.f32 %v241, 0.05
    %v243 = vadd.f32 %v88, %v242
    %244 = vst [vmem:[#allocation9 + $0x4] sm:$0x1] %v228
    %245 = vst [vmem:[#allocation9 + $0x5] sm:$0x1] %v233
    %246 = vst [vmem:[#allocation9 + $0x6] sm:$0x1] %v238
    %247 = vst [vmem:[#allocation9 + $0x7] sm:$0x1] %v243
    %v248 = vmul.f32 %v228, %v93
    %v249 = vmul.f32 %v233, %v95
    %v250 = vadd.f32 %v248, %v249
    %v251 = vmul.f32 %v238, %v98
    %v252 = vadd.f32 %v250, %v251
    %v253 = vmul.f32 %v243, %v101
    %v254 = vadd.f32 %v252, %v253
    %v255 = vadd.f32 %v254, %v104
    %v256 = vtanh.pop %v255
    %v257 = vmul.f32 %v228, %v107
    %v258 = vmul.f32 %v233, %v109
    %v259 = vadd.f32 %v257, %v258
    %v260 = vmul.f32 %v238, %v112
    %v261 = vadd.f32 %v259, %v260
    %v262 = vmul.f32 %v243, %v115
    %v263 = vadd.f32 %v261, %v262
    %v264 = vadd.f32 %v263, %v118
    %v265 = vtanh.pop %v264
    %v266 = vmul.f32 %v228, %v121
    %v267 = vmul.f32 %v233, %v123
    %v268 = vadd.f32 %v266, %v267
    %v269 = vmul.f32 %v238, %v126
    %v270 = vadd.f32 %v268, %v269
    %v271 = vmul.f32 %v243, %v129
    %v272 = vadd.f32 %v270, %v271
    %v273 = vadd.f32 %v272, %v132
    %v274 = vtanh.pop %v273
    %v275 = vmul.f32 %v228, %v135
    %v276 = vmul.f32 %v233, %v137
    %v277 = vadd.f32 %v275, %v276
    %v278 = vmul.f32 %v238, %v140
    %v279 = vadd.f32 %v277, %v278
    %v280 = vmul.f32 %v243, %v143
    %v281 = vadd.f32 %v279, %v280
    %v282 = vadd.f32 %v281, %v146
    %v283 = vtanh.pop %v282
    %v284 = vmul.f32 %v256, %v93
    %v285 = vmul.f32 %v265, %v107
    %v286 = vadd.f32 %v284, %v285
    %v287 = vmul.f32 %v274, %v121
    %v288 = vadd.f32 %v286, %v287
    %v289 = vmul.f32 %v283, %v135
    %v290 = vadd.f32 %v288, %v289
    %v291 = vmul.f32 %v256, %v95
    %v292 = vmul.f32 %v265, %v109
    %v293 = vadd.f32 %v291, %v292
    %v294 = vmul.f32 %v274, %v123
    %v295 = vadd.f32 %v293, %v294
    %v296 = vmul.f32 %v283, %v137
    %v297 = vadd.f32 %v295, %v296
    %v298 = vmul.f32 %v256, %v98
    %v299 = vmul.f32 %v265, %v112
    %v300 = vadd.f32 %v298, %v299
    %v301 = vmul.f32 %v274, %v126
    %v302 = vadd.f32 %v300, %v301
    %v303 = vmul.f32 %v283, %v140
    %v304 = vadd.f32 %v302, %v303
    %v305 = vmul.f32 %v256, %v101
    %v306 = vmul.f32 %v265, %v115
    %v307 = vadd.f32 %v305, %v306
    %v308 = vmul.f32 %v274, %v129
    %v309 = vadd.f32 %v307, %v308
    %v310 = vmul.f32 %v283, %v143
    %v311 = vadd.f32 %v309, %v310
    %v312 = vmul.f32 %v228, %v177
    %v313 = vmul.f32 %v233, %v179
    %v314 = vadd.f32 %v312, %v313
    %v315 = vmul.f32 %v238, %v182
    %v316 = vadd.f32 %v314, %v315
    %v317 = vmul.f32 %v243, %v185
    %v318 = vadd.f32 %v316, %v317
    %v319 = vmul.f32 %v290, %v188
    %v320 = vadd.f32 %v318, %v319
    %v321 = vmul.f32 %v297, %v191
    %v322 = vadd.f32 %v320, %v321
    %v323 = vmul.f32 %v304, %v194
    %v324 = vadd.f32 %v322, %v323
    %v325 = vmul.f32 %v311, %v197
    %v326 = vadd.f32 %v324, %v325
    %v327 = vadd.f32 %v326, %v200
    %v328 = vxor.u32 %v327, 2147483648
    %v329 = vmul.f32 %v328, 1.442695
    %v330 = vpow.pop %v329
    %v331 = vadd.f32 %v330, 1.0
    %v332 = vrcp.pop %v331
    %v333 = vmul.f32 1.0, %v332
    %v334 = vmul.f32 %v333, %v311
    %v335 = vmul.f32 %v334, %v311
    %v336 = vmul.f32 %v311, %v211
    %v337 = vmul.f32 %v311, %v214
    %v338 = vmul.f32 %v297, %v216
    %v339 = vmul.f32 %v304, %v218
    %v340 = vadd.f32 %v338, %v339
    %v341 = vmul.f32 %v334, %v290
    %v342 = vsub.f32 %v340, %v341
    %v343 = vld [vmem:[#allocation7 + $0x1] sm:$0x1]
    %v344 = vmul.f32 %v343, %v224
    %v345 = vadd.f32 %v335, %v344
    %v346 = vmul.f32 %v345, 0.05
    %v347 = vadd.f32 %v228, %v346
    %v348 = vmul.f32 %v343, %v229
    %v349 = vadd.f32 %v336, %v348
    %v350 = vmul.f32 %v349, 0.05
    %v351 = vadd.f32 %v233, %v350
    %v352 = vmul.f32 %v343, %v234
    %v353 = vadd.f32 %v337, %v352
    %v354 = vmul.f32 %v353, 0.05
    %v355 = vadd.f32 %v238, %v354
    %v356 = vmul.f32 %v343, %v239
    %v357 = vadd.f32 %v342, %v356
    %v358 = vmul.f32 %v357, 0.05
    %v359 = vadd.f32 %v243, %v358
    %360 = vst [vmem:[#allocation9 + $0x8] sm:$0x1] %v347
    %361 = vst [vmem:[#allocation9 + $0x9] sm:$0x1] %v351
    %362 = vst [vmem:[#allocation9 + $0xa] sm:$0x1] %v355
    %363 = vst [vmem:[#allocation9 + $0xb] sm:$0x1] %v359
    %v364 = vmul.f32 %v347, %v93
    %v365 = vmul.f32 %v351, %v95
    %v366 = vadd.f32 %v364, %v365
    %v367 = vmul.f32 %v355, %v98
    %v368 = vadd.f32 %v366, %v367
    %v369 = vmul.f32 %v359, %v101
    %v370 = vadd.f32 %v368, %v369
    %v371 = vadd.f32 %v370, %v104
    %v372 = vtanh.pop %v371
    %v373 = vmul.f32 %v347, %v107
    %v374 = vmul.f32 %v351, %v109
    %v375 = vadd.f32 %v373, %v374
    %v376 = vmul.f32 %v355, %v112
    %v377 = vadd.f32 %v375, %v376
    %v378 = vmul.f32 %v359, %v115
    %v379 = vadd.f32 %v377, %v378
    %v380 = vadd.f32 %v379, %v118
    %v381 = vtanh.pop %v380
    %v382 = vmul.f32 %v347, %v121
    %v383 = vmul.f32 %v351, %v123
    %v384 = vadd.f32 %v382, %v383
    %v385 = vmul.f32 %v355, %v126
    %v386 = vadd.f32 %v384, %v385
    %v387 = vmul.f32 %v359, %v129
    %v388 = vadd.f32 %v386, %v387
    %v389 = vadd.f32 %v388, %v132
    %v390 = vtanh.pop %v389
    %v391 = vmul.f32 %v347, %v135
    %v392 = vmul.f32 %v351, %v137
    %v393 = vadd.f32 %v391, %v392
    %v394 = vmul.f32 %v355, %v140
    %v395 = vadd.f32 %v393, %v394
    %v396 = vmul.f32 %v359, %v143
    %v397 = vadd.f32 %v395, %v396
    %v398 = vadd.f32 %v397, %v146
    %v399 = vtanh.pop %v398
    %v400 = vmul.f32 %v372, %v93
    %v401 = vmul.f32 %v381, %v107
    %v402 = vadd.f32 %v400, %v401
    %v403 = vmul.f32 %v390, %v121
    %v404 = vadd.f32 %v402, %v403
    %v405 = vmul.f32 %v399, %v135
    %v406 = vadd.f32 %v404, %v405
    %v407 = vmul.f32 %v372, %v95
    %v408 = vmul.f32 %v381, %v109
    %v409 = vadd.f32 %v407, %v408
    %v410 = vmul.f32 %v390, %v123
    %v411 = vadd.f32 %v409, %v410
    %v412 = vmul.f32 %v399, %v137
    %v413 = vadd.f32 %v411, %v412
    %v414 = vmul.f32 %v372, %v98
    %v415 = vmul.f32 %v381, %v112
    %v416 = vadd.f32 %v414, %v415
    %v417 = vmul.f32 %v390, %v126
    %v418 = vadd.f32 %v416, %v417
    %v419 = vmul.f32 %v399, %v140
    %v420 = vadd.f32 %v418, %v419
    %v421 = vmul.f32 %v372, %v101
    %v422 = vmul.f32 %v381, %v115
    %v423 = vadd.f32 %v421, %v422
    %v424 = vmul.f32 %v390, %v129
    %v425 = vadd.f32 %v423, %v424
    %v426 = vmul.f32 %v399, %v143
    %v427 = vadd.f32 %v425, %v426
    %v428 = vmul.f32 %v347, %v177
    %v429 = vmul.f32 %v351, %v179
    %v430 = vadd.f32 %v428, %v429
    %v431 = vmul.f32 %v355, %v182
    %v432 = vadd.f32 %v430, %v431
    %v433 = vmul.f32 %v359, %v185
    %v434 = vadd.f32 %v432, %v433
    %v435 = vmul.f32 %v406, %v188
    %v436 = vadd.f32 %v434, %v435
    %v437 = vmul.f32 %v413, %v191
    %v438 = vadd.f32 %v436, %v437
    %v439 = vmul.f32 %v420, %v194
    %v440 = vadd.f32 %v438, %v439
    %v441 = vmul.f32 %v427, %v197
    %v442 = vadd.f32 %v440, %v441
    %v443 = vadd.f32 %v442, %v200
    %v444 = vxor.u32 %v443, 2147483648
    %v445 = vmul.f32 %v444, 1.442695
    %v446 = vpow.pop %v445
    %v447 = vadd.f32 %v446, 1.0
    %v448 = vrcp.pop %v447
    %v449 = vmul.f32 1.0, %v448
    %v450 = vmul.f32 %v449, %v427
    %v451 = vmul.f32 %v450, %v427
    %v452 = vmul.f32 %v427, %v211
    %v453 = vmul.f32 %v427, %v214
    %v454 = vmul.f32 %v413, %v216
    %v455 = vmul.f32 %v420, %v218
    %v456 = vadd.f32 %v454, %v455
    %v457 = vmul.f32 %v450, %v406
    %v458 = vsub.f32 %v456, %v457
    %v459 = vld [vmem:[#allocation7 + $0x2] sm:$0x1]
    %v460 = vmul.f32 %v459, %v224
    %v461 = vadd.f32 %v451, %v460
    %v462 = vmul.f32 %v461, 0.05
    %v463 = vadd.f32 %v347, %v462
    %v464 = vmul.f32 %v459, %v229
    %v465 = vadd.f32 %v452, %v464
    %v466 = vmul.f32 %v465, 0.05
    %v467 = vadd.f32 %v351, %v466
    %v468 = vmul.f32 %v459, %v234
    %v469 = vadd.f32 %v453, %v468
    %v470 = vmul.f32 %v469, 0.05
    %v471 = vadd.f32 %v355, %v470
    %v472 = vmul.f32 %v459, %v239
    %v473 = vadd.f32 %v458, %v472
    %v474 = vmul.f32 %v473, 0.05
    %v475 = vadd.f32 %v359, %v474
    %476 = vst [vmem:[#allocation9 + $0xc] sm:$0x1] %v463
    %477 = vst [vmem:[#allocation9 + $0xd] sm:$0x1] %v467
    %478 = vst [vmem:[#allocation9 + $0xe] sm:$0x1] %v471
    %479 = vst [vmem:[#allocation9 + $0xf] sm:$0x1] %v475
    %v480 = vmul.f32 %v463, %v93
    %v481 = vmul.f32 %v467, %v95
    %v482 = vadd.f32 %v480, %v481
    %v483 = vmul.f32 %v471, %v98
    %v484 = vadd.f32 %v482, %v483
    %v485 = vmul.f32 %v475, %v101
    %v486 = vadd.f32 %v484, %v485
    %v487 = vadd.f32 %v486, %v104
    %v488 = vtanh.pop %v487
    %v489 = vmul.f32 %v463, %v107
    %v490 = vmul.f32 %v467, %v109
    %v491 = vadd.f32 %v489, %v490
    %v492 = vmul.f32 %v471, %v112
    %v493 = vadd.f32 %v491, %v492
    %v494 = vmul.f32 %v475, %v115
    %v495 = vadd.f32 %v493, %v494
    %v496 = vadd.f32 %v495, %v118
    %v497 = vtanh.pop %v496
    %v498 = vmul.f32 %v463, %v121
    %v499 = vmul.f32 %v467, %v123
    %v500 = vadd.f32 %v498, %v499
    %v501 = vmul.f32 %v471, %v126
    %v502 = vadd.f32 %v500, %v501
    %v503 = vmul.f32 %v475, %v129
    %v504 = vadd.f32 %v502, %v503
    %v505 = vadd.f32 %v504, %v132
    %v506 = vtanh.pop %v505
    %v507 = vmul.f32 %v463, %v135
    %v508 = vmul.f32 %v467, %v137
    %v509 = vadd.f32 %v507, %v508
    %v510 = vmul.f32 %v471, %v140
    %v511 = vadd.f32 %v509, %v510
    %v512 = vmul.f32 %v475, %v143
    %v513 = vadd.f32 %v511, %v512
    %v514 = vadd.f32 %v513, %v146
    %v515 = vtanh.pop %v514
    %v516 = vmul.f32 %v488, %v93
    %v517 = vmul.f32 %v497, %v107
    %v518 = vadd.f32 %v516, %v517
    %v519 = vmul.f32 %v506, %v121
    %v520 = vadd.f32 %v518, %v519
    %v521 = vmul.f32 %v515, %v135
    %v522 = vadd.f32 %v520, %v521
    %v523 = vmul.f32 %v488, %v95
    %v524 = vmul.f32 %v497, %v109
    %v525 = vadd.f32 %v523, %v524
    %v526 = vmul.f32 %v506, %v123
    %v527 = vadd.f32 %v525, %v526
    %v528 = vmul.f32 %v515, %v137
    %v529 = vadd.f32 %v527, %v528
    %v530 = vmul.f32 %v488, %v98
    %v531 = vmul.f32 %v497, %v112
    %v532 = vadd.f32 %v530, %v531
    %v533 = vmul.f32 %v506, %v126
    %v534 = vadd.f32 %v532, %v533
    %v535 = vmul.f32 %v515, %v140
    %v536 = vadd.f32 %v534, %v535
    %v537 = vmul.f32 %v488, %v101
    %v538 = vmul.f32 %v497, %v115
    %v539 = vadd.f32 %v537, %v538
    %v540 = vmul.f32 %v506, %v129
    %v541 = vadd.f32 %v539, %v540
    %v542 = vmul.f32 %v515, %v143
    %v543 = vadd.f32 %v541, %v542
    %v544 = vmul.f32 %v463, %v177
    %v545 = vmul.f32 %v467, %v179
    %v546 = vadd.f32 %v544, %v545
    %v547 = vmul.f32 %v471, %v182
    %v548 = vadd.f32 %v546, %v547
    %v549 = vmul.f32 %v475, %v185
    %v550 = vadd.f32 %v548, %v549
    %v551 = vmul.f32 %v522, %v188
    %v552 = vadd.f32 %v550, %v551
    %v553 = vmul.f32 %v529, %v191
    %v554 = vadd.f32 %v552, %v553
    %v555 = vmul.f32 %v536, %v194
    %v556 = vadd.f32 %v554, %v555
    %v557 = vmul.f32 %v543, %v197
    %v558 = vadd.f32 %v556, %v557
    %v559 = vadd.f32 %v558, %v200
    %v560 = vxor.u32 %v559, 2147483648
    %v561 = vmul.f32 %v560, 1.442695
    %v562 = vpow.pop %v561
    %v563 = vadd.f32 %v562, 1.0
    %v564 = vrcp.pop %v563
    %v565 = vmul.f32 1.0, %v564
    %v566 = vmul.f32 %v565, %v543
    %v567 = vmul.f32 %v566, %v543
    %v568 = vmul.f32 %v543, %v211
    %v569 = vmul.f32 %v543, %v214
    %v570 = vmul.f32 %v529, %v216
    %v571 = vmul.f32 %v536, %v218
    %v572 = vadd.f32 %v570, %v571
    %v573 = vmul.f32 %v566, %v522
    %v574 = vsub.f32 %v572, %v573
    %v575 = vld [vmem:[#allocation7 + $0x3] sm:$0x1]
    %v576 = vmul.f32 %v575, %v224
    %v577 = vadd.f32 %v567, %v576
    %v578 = vmul.f32 %v577, 0.05
    %v579 = vadd.f32 %v463, %v578
    %v580 = vmul.f32 %v575, %v229
    %v581 = vadd.f32 %v568, %v580
    %v582 = vmul.f32 %v581, 0.05
    %v583 = vadd.f32 %v467, %v582
    %v584 = vmul.f32 %v575, %v234
    %v585 = vadd.f32 %v569, %v584
    %v586 = vmul.f32 %v585, 0.05
    %v587 = vadd.f32 %v471, %v586
    %v588 = vmul.f32 %v575, %v239
    %v589 = vadd.f32 %v574, %v588
    %v590 = vmul.f32 %v589, 0.05
    %v591 = vadd.f32 %v475, %v590
    %592 = vst [vmem:[#allocation9 + $0x10] sm:$0x1] %v579
    %593 = vst [vmem:[#allocation9 + $0x11] sm:$0x1] %v583
    %594 = vst [vmem:[#allocation9 + $0x12] sm:$0x1] %v587
    %595 = vst [vmem:[#allocation9 + $0x13] sm:$0x1] %v591
    %v596 = vmul.f32 %v579, %v93
    %v597 = vmul.f32 %v583, %v95
    %v598 = vadd.f32 %v596, %v597
    %v599 = vmul.f32 %v587, %v98
    %v600 = vadd.f32 %v598, %v599
    %v601 = vmul.f32 %v591, %v101
    %v602 = vadd.f32 %v600, %v601
    %v603 = vadd.f32 %v602, %v104
    %v604 = vtanh.pop %v603
    %v605 = vmul.f32 %v579, %v107
    %v606 = vmul.f32 %v583, %v109
    %v607 = vadd.f32 %v605, %v606
    %v608 = vmul.f32 %v587, %v112
    %v609 = vadd.f32 %v607, %v608
    %v610 = vmul.f32 %v591, %v115
    %v611 = vadd.f32 %v609, %v610
    %v612 = vadd.f32 %v611, %v118
    %v613 = vtanh.pop %v612
    %v614 = vmul.f32 %v579, %v121
    %v615 = vmul.f32 %v583, %v123
    %v616 = vadd.f32 %v614, %v615
    %v617 = vmul.f32 %v587, %v126
    %v618 = vadd.f32 %v616, %v617
    %v619 = vmul.f32 %v591, %v129
    %v620 = vadd.f32 %v618, %v619
    %v621 = vadd.f32 %v620, %v132
    %v622 = vtanh.pop %v621
    %v623 = vmul.f32 %v579, %v135
    %v624 = vmul.f32 %v583, %v137
    %v625 = vadd.f32 %v623, %v624
    %v626 = vmul.f32 %v587, %v140
    %v627 = vadd.f32 %v625, %v626
    %v628 = vmul.f32 %v591, %v143
    %v629 = vadd.f32 %v627, %v628
    %v630 = vadd.f32 %v629, %v146
    %v631 = vtanh.pop %v630
    %v632 = vmul.f32 %v604, %v93
    %v633 = vmul.f32 %v613, %v107
    %v634 = vadd.f32 %v632, %v633
    %v635 = vmul.f32 %v622, %v121
    %v636 = vadd.f32 %v634, %v635
    %v637 = vmul.f32 %v631, %v135
    %v638 = vadd.f32 %v636, %v637
    %v639 = vmul.f32 %v604, %v95
    %v640 = vmul.f32 %v613, %v109
    %v641 = vadd.f32 %v639, %v640
    %v642 = vmul.f32 %v622, %v123
    %v643 = vadd.f32 %v641, %v642
    %v644 = vmul.f32 %v631, %v137
    %v645 = vadd.f32 %v643, %v644
    %v646 = vmul.f32 %v604, %v98
    %v647 = vmul.f32 %v613, %v112
    %v648 = vadd.f32 %v646, %v647
    %v649 = vmul.f32 %v622, %v126
    %v650 = vadd.f32 %v648, %v649
    %v651 = vmul.f32 %v631, %v140
    %v652 = vadd.f32 %v650, %v651
    %v653 = vmul.f32 %v604, %v101
    %v654 = vmul.f32 %v613, %v115
    %v655 = vadd.f32 %v653, %v654
    %v656 = vmul.f32 %v622, %v129
    %v657 = vadd.f32 %v655, %v656
    %v658 = vmul.f32 %v631, %v143
    %v659 = vadd.f32 %v657, %v658
    %v660 = vmul.f32 %v579, %v177
    %v661 = vmul.f32 %v583, %v179
    %v662 = vadd.f32 %v660, %v661
    %v663 = vmul.f32 %v587, %v182
    %v664 = vadd.f32 %v662, %v663
    %v665 = vmul.f32 %v591, %v185
    %v666 = vadd.f32 %v664, %v665
    %v667 = vmul.f32 %v638, %v188
    %v668 = vadd.f32 %v666, %v667
    %v669 = vmul.f32 %v645, %v191
    %v670 = vadd.f32 %v668, %v669
    %v671 = vmul.f32 %v652, %v194
    %v672 = vadd.f32 %v670, %v671
    %v673 = vmul.f32 %v659, %v197
    %v674 = vadd.f32 %v672, %v673
    %v675 = vadd.f32 %v674, %v200
    %v676 = vxor.u32 %v675, 2147483648
    %v677 = vmul.f32 %v676, 1.442695
    %v678 = vpow.pop %v677
    %v679 = vadd.f32 %v678, 1.0
    %v680 = vrcp.pop %v679
    %v681 = vmul.f32 1.0, %v680
    %v682 = vmul.f32 %v681, %v659
    %v683 = vmul.f32 %v682, %v659
    %v684 = vmul.f32 %v659, %v211
    %v685 = vmul.f32 %v659, %v214
    %v686 = vmul.f32 %v645, %v216
    %v687 = vmul.f32 %v652, %v218
    %v688 = vadd.f32 %v686, %v687
    %v689 = vmul.f32 %v682, %v638
    %v690 = vsub.f32 %v688, %v689
    %v691 = vld [vmem:[#allocation7 + $0x4] sm:$0x1]
    %v692 = vmul.f32 %v691, %v224
    %v693 = vadd.f32 %v683, %v692
    %v694 = vmul.f32 %v693, 0.05
    %v695 = vadd.f32 %v579, %v694
    %v696 = vmul.f32 %v691, %v229
    %v697 = vadd.f32 %v684, %v696
    %v698 = vmul.f32 %v697, 0.05
    %v699 = vadd.f32 %v583, %v698
    %v700 = vmul.f32 %v691, %v234
    %v701 = vadd.f32 %v685, %v700
    %v702 = vmul.f32 %v701, 0.05
    %v703 = vadd.f32 %v587, %v702
    %v704 = vmul.f32 %v691, %v239
    %v705 = vadd.f32 %v690, %v704
    %v706 = vmul.f32 %v705, 0.05
    %v707 = vadd.f32 %v591, %v706
    %708 = vst [vmem:[#allocation9 + $0x14] sm:$0x1] %v695
    %709 = vst [vmem:[#allocation9 + $0x15] sm:$0x1] %v699
    %710 = vst [vmem:[#allocation9 + $0x16] sm:$0x1] %v703
    %711 = vst [vmem:[#allocation9 + $0x17] sm:$0x1] %v707
    %v712 = vmul.f32 %v695, %v93
    %v713 = vmul.f32 %v699, %v95
    %v714 = vadd.f32 %v712, %v713
    %v715 = vmul.f32 %v703, %v98
    %v716 = vadd.f32 %v714, %v715
    %v717 = vmul.f32 %v707, %v101
    %v718 = vadd.f32 %v716, %v717
    %v719 = vadd.f32 %v718, %v104
    %v720 = vtanh.pop %v719
    %v721 = vmul.f32 %v695, %v107
    %v722 = vmul.f32 %v699, %v109
    %v723 = vadd.f32 %v721, %v722
    %v724 = vmul.f32 %v703, %v112
    %v725 = vadd.f32 %v723, %v724
    %v726 = vmul.f32 %v707, %v115
    %v727 = vadd.f32 %v725, %v726
    %v728 = vadd.f32 %v727, %v118
    %v729 = vtanh.pop %v728
    %v730 = vmul.f32 %v695, %v121
    %v731 = vmul.f32 %v699, %v123
    %v732 = vadd.f32 %v730, %v731
    %v733 = vmul.f32 %v703, %v126
    %v734 = vadd.f32 %v732, %v733
    %v735 = vmul.f32 %v707, %v129
    %v736 = vadd.f32 %v734, %v735
    %v737 = vadd.f32 %v736, %v132
    %v738 = vtanh.pop %v737
    %v739 = vmul.f32 %v695, %v135
    %v740 = vmul.f32 %v699, %v137
    %v741 = vadd.f32 %v739, %v740
    %v742 = vmul.f32 %v703, %v140
    %v743 = vadd.f32 %v741, %v742
    %v744 = vmul.f32 %v707, %v143
    %v745 = vadd.f32 %v743, %v744
    %v746 = vadd.f32 %v745, %v146
    %v747 = vtanh.pop %v746
    %v748 = vmul.f32 %v720, %v93
    %v749 = vmul.f32 %v729, %v107
    %v750 = vadd.f32 %v748, %v749
    %v751 = vmul.f32 %v738, %v121
    %v752 = vadd.f32 %v750, %v751
    %v753 = vmul.f32 %v747, %v135
    %v754 = vadd.f32 %v752, %v753
    %v755 = vmul.f32 %v720, %v95
    %v756 = vmul.f32 %v729, %v109
    %v757 = vadd.f32 %v755, %v756
    %v758 = vmul.f32 %v738, %v123
    %v759 = vadd.f32 %v757, %v758
    %v760 = vmul.f32 %v747, %v137
    %v761 = vadd.f32 %v759, %v760
    %v762 = vmul.f32 %v720, %v98
    %v763 = vmul.f32 %v729, %v112
    %v764 = vadd.f32 %v762, %v763
    %v765 = vmul.f32 %v738, %v126
    %v766 = vadd.f32 %v764, %v765
    %v767 = vmul.f32 %v747, %v140
    %v768 = vadd.f32 %v766, %v767
    %v769 = vmul.f32 %v720, %v101
    %v770 = vmul.f32 %v729, %v115
    %v771 = vadd.f32 %v769, %v770
    %v772 = vmul.f32 %v738, %v129
    %v773 = vadd.f32 %v771, %v772
    %v774 = vmul.f32 %v747, %v143
    %v775 = vadd.f32 %v773, %v774
    %v776 = vmul.f32 %v695, %v177
    %v777 = vmul.f32 %v699, %v179
    %v778 = vadd.f32 %v776, %v777
    %v779 = vmul.f32 %v703, %v182
    %v780 = vadd.f32 %v778, %v779
    %v781 = vmul.f32 %v707, %v185
    %v782 = vadd.f32 %v780, %v781
    %v783 = vmul.f32 %v754, %v188
    %v784 = vadd.f32 %v782, %v783
    %v785 = vmul.f32 %v761, %v191
    %v786 = vadd.f32 %v784, %v785
    %v787 = vmul.f32 %v768, %v194
    %v788 = vadd.f32 %v786, %v787
    %v789 = vmul.f32 %v775, %v197
    %v790 = vadd.f32 %v788, %v789
    %v791 = vadd.f32 %v790, %v200
    %v792 = vxor.u32 %v791, 2147483648
    %v793 = vmul.f32 %v792, 1.442695
    %v794 = vpow.pop %v793
    %v795 = vadd.f32 %v794, 1.0
    %v796 = vrcp.pop %v795
    %v797 = vmul.f32 1.0, %v796
    %v798 = vmul.f32 %v797, %v775
    %v799 = vmul.f32 %v798, %v775
    %v800 = vmul.f32 %v775, %v211
    %v801 = vmul.f32 %v775, %v214
    %v802 = vmul.f32 %v761, %v216
    %v803 = vmul.f32 %v768, %v218
    %v804 = vadd.f32 %v802, %v803
    %v805 = vmul.f32 %v798, %v754
    %v806 = vsub.f32 %v804, %v805
    %v807 = vld [vmem:[#allocation7 + $0x5] sm:$0x1]
    %v808 = vmul.f32 %v807, %v224
    %v809 = vadd.f32 %v799, %v808
    %v810 = vmul.f32 %v809, 0.05
    %v811 = vadd.f32 %v695, %v810
    %v812 = vmul.f32 %v807, %v229
    %v813 = vadd.f32 %v800, %v812
    %v814 = vmul.f32 %v813, 0.05
    %v815 = vadd.f32 %v699, %v814
    %v816 = vmul.f32 %v807, %v234
    %v817 = vadd.f32 %v801, %v816
    %v818 = vmul.f32 %v817, 0.05
    %v819 = vadd.f32 %v703, %v818
    %v820 = vmul.f32 %v807, %v239
    %v821 = vadd.f32 %v806, %v820
    %v822 = vmul.f32 %v821, 0.05
    %v823 = vadd.f32 %v707, %v822
    %824 = vst [vmem:[#allocation9 + $0x18] sm:$0x1] %v811
    %825 = vst [vmem:[#allocation9 + $0x19] sm:$0x1] %v815
    %826 = vst [vmem:[#allocation9 + $0x1a] sm:$0x1] %v819
    %827 = vst [vmem:[#allocation9 + $0x1b] sm:$0x1] %v823
    %v828 = vmul.f32 %v811, %v93
    %v829 = vmul.f32 %v815, %v95
    %v830 = vadd.f32 %v828, %v829
    %v831 = vmul.f32 %v819, %v98
    %v832 = vadd.f32 %v830, %v831
    %v833 = vmul.f32 %v823, %v101
    %v834 = vadd.f32 %v832, %v833
    %v835 = vadd.f32 %v834, %v104
    %v836 = vtanh.pop %v835
    %v837 = vmul.f32 %v811, %v107
    %v838 = vmul.f32 %v815, %v109
    %v839 = vadd.f32 %v837, %v838
    %v840 = vmul.f32 %v819, %v112
    %v841 = vadd.f32 %v839, %v840
    %v842 = vmul.f32 %v823, %v115
    %v843 = vadd.f32 %v841, %v842
    %v844 = vadd.f32 %v843, %v118
    %v845 = vtanh.pop %v844
    %v846 = vmul.f32 %v811, %v121
    %v847 = vmul.f32 %v815, %v123
    %v848 = vadd.f32 %v846, %v847
    %v849 = vmul.f32 %v819, %v126
    %v850 = vadd.f32 %v848, %v849
    %v851 = vmul.f32 %v823, %v129
    %v852 = vadd.f32 %v850, %v851
    %v853 = vadd.f32 %v852, %v132
    %v854 = vtanh.pop %v853
    %v855 = vmul.f32 %v811, %v135
    %v856 = vmul.f32 %v815, %v137
    %v857 = vadd.f32 %v855, %v856
    %v858 = vmul.f32 %v819, %v140
    %v859 = vadd.f32 %v857, %v858
    %v860 = vmul.f32 %v823, %v143
    %v861 = vadd.f32 %v859, %v860
    %v862 = vadd.f32 %v861, %v146
    %v863 = vtanh.pop %v862
    %v864 = vmul.f32 %v836, %v93
    %v865 = vmul.f32 %v845, %v107
    %v866 = vadd.f32 %v864, %v865
    %v867 = vmul.f32 %v854, %v121
    %v868 = vadd.f32 %v866, %v867
    %v869 = vmul.f32 %v863, %v135
    %v870 = vadd.f32 %v868, %v869
    %v871 = vmul.f32 %v836, %v95
    %v872 = vmul.f32 %v845, %v109
    %v873 = vadd.f32 %v871, %v872
    %v874 = vmul.f32 %v854, %v123
    %v875 = vadd.f32 %v873, %v874
    %v876 = vmul.f32 %v863, %v137
    %v877 = vadd.f32 %v875, %v876
    %v878 = vmul.f32 %v836, %v98
    %v879 = vmul.f32 %v845, %v112
    %v880 = vadd.f32 %v878, %v879
    %v881 = vmul.f32 %v854, %v126
    %v882 = vadd.f32 %v880, %v881
    %v883 = vmul.f32 %v863, %v140
    %v884 = vadd.f32 %v882, %v883
    %v885 = vmul.f32 %v836, %v101
    %v886 = vmul.f32 %v845, %v115
    %v887 = vadd.f32 %v885, %v886
    %v888 = vmul.f32 %v854, %v129
    %v889 = vadd.f32 %v887, %v888
    %v890 = vmul.f32 %v863, %v143
    %v891 = vadd.f32 %v889, %v890
    %v892 = vmul.f32 %v811, %v177
    %v893 = vmul.f32 %v815, %v179
    %v894 = vadd.f32 %v892, %v893
    %v895 = vmul.f32 %v819, %v182
    %v896 = vadd.f32 %v894, %v895
    %v897 = vmul.f32 %v823, %v185
    %v898 = vadd.f32 %v896, %v897
    %v899 = vmul.f32 %v870, %v188
    %v900 = vadd.f32 %v898, %v899
    %v901 = vmul.f32 %v877, %v191
    %v902 = vadd.f32 %v900, %v901
    %v903 = vmul.f32 %v884, %v194
    %v904 = vadd.f32 %v902, %v903
    %v905 = vmul.f32 %v891, %v197
    %v906 = vadd.f32 %v904, %v905
    %v907 = vadd.f32 %v906, %v200
    %v908 = vxor.u32 %v907, 2147483648
    %v909 = vmul.f32 %v908, 1.442695
    %v910 = vpow.pop %v909
    %v911 = vadd.f32 %v910, 1.0
    %v912 = vrcp.pop %v911
    %v913 = vmul.f32 1.0, %v912
    %v914 = vmul.f32 %v913, %v891
    %v915 = vmul.f32 %v914, %v891
    %v916 = vmul.f32 %v891, %v211
    %v917 = vmul.f32 %v891, %v214
    %v918 = vmul.f32 %v877, %v216
    %v919 = vmul.f32 %v884, %v218
    %v920 = vadd.f32 %v918, %v919
    %v921 = vmul.f32 %v914, %v870
    %v922 = vsub.f32 %v920, %v921
    %v923 = vld [vmem:[#allocation7 + $0x6] sm:$0x1]
    %v924 = vmul.f32 %v923, %v224
    %v925 = vadd.f32 %v915, %v924
    %v926 = vmul.f32 %v925, 0.05
    %v927 = vadd.f32 %v811, %v926
    %v928 = vmul.f32 %v923, %v229
    %v929 = vadd.f32 %v916, %v928
    %v930 = vmul.f32 %v929, 0.05
    %v931 = vadd.f32 %v815, %v930
    %v932 = vmul.f32 %v923, %v234
    %v933 = vadd.f32 %v917, %v932
    %v934 = vmul.f32 %v933, 0.05
    %v935 = vadd.f32 %v819, %v934
    %v936 = vmul.f32 %v923, %v239
    %v937 = vadd.f32 %v922, %v936
    %v938 = vmul.f32 %v937, 0.05
    %v939 = vadd.f32 %v823, %v938
    %940 = vst [vmem:[#allocation9 + $0x1c] sm:$0x1] %v927
    %941 = vst [vmem:[#allocation9 + $0x1d] sm:$0x1] %v931
    %942 = vst [vmem:[#allocation9 + $0x1e] sm:$0x1] %v935
    %943 = vst [vmem:[#allocation9 + $0x1f] sm:$0x1] %v939
    // Predicated region
    $region26: #{tpu_custom_call.1} parent=1 // pred_check
      _
    $region27: #{tpu_custom_call.1} parent=1 // pred_check_branch
      %945 = sbr.rel (0) target = $region29
    $region28: #{tpu_custom_call.1} parent=1 // pred_region
      %s947 = ssub.s32 512, 512
      %948 = vsyncadd [#allocation4], %s947
      %s949 = sshll.u32 [#allocation9], 4
      %s950 = int_to_ptr.vmem [resolvable:$true] %s949
      %955 = dma.vmem_to_hbm [thread:$0]  %s950, 512, %s3, [#allocation4], 128, 128, 8
    $region29: #{tpu_custom_call.1} parent=1 // pred_fallthru
      _
    // Predicated region
    $region30: #{tpu_custom_call.1} parent=1 // pred_check
      _
    $region31: #{tpu_custom_call.1} parent=1 // pred_check_branch
      %957 = sbr.rel (0) target = $region33
    $region32: #{tpu_custom_call.1} parent=1 // pred_region
      %958 = dma.done [#allocation4], 512
    $region33: #{tpu_custom_call.1} parent=1 // pred_fallthru
      _
    %959 = vsyncpa [#allocation3], 1
    %960 = vsyncpa [#allocation8], 1
    %961 = vsyncpa [#allocation4], 1
    %962 = vsyncpa [#allocation5], 1

</llo_original>
